<compile_context>
chip_gen: v6e
topology: v6e:2x2x1
jax: 0.10.0
libtpu: 0.0.40
codegen_flags: <defaults>
</compile_context>

<pallas_src>
import math

import jax
import jax.numpy as jnp
from jax.experimental import pallas as pl
from jax.experimental.pallas import tpu as pltpu


def _round_up(x, m):
    return ((x + m - 1) // m) * m


def _dynamics_init_packed_kernel(ab_ref, c1_ref, c2_ref, mr_ref, mb_ref,
                                 x_ref, out_ref):
    # ab_ref : SMEM (2,)            = [sqrt(d)/scale1, sqrt(d)/scale2]
    # c1_ref/c2_ref : VMEM (1, 128)   centers tiled `pack` times along lanes
    # mr_ref : VMEM (128, pack)       0/1 segmented-reduce matrix
    # mb_ref : VMEM (pack, 128)       = mr.T, broadcast-back matrix
    # x_ref/out_ref : VMEM (TN, 128)  lane-dense packed tiles
    x = x_ref[...].astype(jnp.float32)
    u1 = (x - c1_ref[...]) * ab_ref[0]                         # VPU
    u2 = (x - c2_ref[...]) * ab_ref[1]

    hi = jax.lax.Precision.HIGHEST                              # f32-exact MXU passes
    s1 = jnp.dot(u1 * u1, mr_ref[...], precision=hi,
                 preferred_element_type=jnp.float32)            # (TN, pack)
    s2 = jnp.dot(u2 * u2, mr_ref[...], precision=hi,
                 preferred_element_type=jnp.float32)
    e1 = jnp.dot(jnp.exp(-s1), mb_ref[...], precision=hi,
                 preferred_element_type=jnp.float32)            # (TN, 128)
    e2 = jnp.dot(jnp.exp(-s2), mb_ref[...], precision=hi,
                 preferred_element_type=jnp.float32)

    # out = 2*u1*(-e1) + 2*u2*(-e2); sign and factor folded into one VPU pass.
    out_ref[...] = ((-2.0) * (u1 * e1 + u2 * e2)).astype(out_ref.dtype)


def _dynamics_init_rowwise_kernel(ab_ref, c1_ref, c2_ref, x_ref, out_ref):
    # Fallback for d that does not divide 128: row-wise XLU reduce.
    x = x_ref[...].astype(jnp.float32)
    u1 = (x - c1_ref[...]) * ab_ref[0]
    u2 = (x - c2_ref[...]) * ab_ref[1]
    e1 = jnp.exp(-jnp.sum(u1 * u1, axis=-1, keepdims=True))
    e2 = jnp.exp(-jnp.sum(u2 * u2, axis=-1, keepdims=True))
    out_ref[...] = ((-2.0) * (u1 * e1 + u2 * e2)).astype(out_ref.dtype)


def dynamics_init_forward(x, c1, c2, scale1, scale2, *, block_rows=8192):
    """Pallas equivalent of dynamics_init.forward(x) for x of shape (N, d)."""
    n, d = x.shape

    # bf16 input -> keep bf16 I/O (halves HBM traffic), compute f32 in-kernel.
    if x.dtype == jnp.bfloat16:
        io_dtype = jnp.bfloat16
    else:
        io_dtype = jnp.float32
        if x.dtype != jnp.float32:
            x = x.astype(jnp.float32)

    sqrt_d = float(math.sqrt(d))
    a1 = sqrt_d / jnp.asarray(scale1, jnp.float32)
    a2 = sqrt_d / jnp.asarray(scale2, jnp.float32)
    ab = jnp.stack([a1, a2])                                     # (2,) -> SMEM
    c1f = jnp.reshape(jnp.asarray(c1, jnp.float32), (1, d))
    c2f = jnp.reshape(jnp.asarray(c2, jnp.float32), (1, d))

    compiler_params = pltpu.CompilerParams(
        dimension_semantics=("parallel",),                       # v7x: 2-TC shard
    )

    if d <= 128 and 128 % d == 0:
        # ---- lane-dense packed path: `pack` original rows per 128-lane row ----
        pack = 128 // d
        n_pad = _round_up(n, pack)
        if n_pad != n:
            # TODO(synk): tiny (<pack rows) pad/slice pair only when N % pack != 0.
            x = jnp.pad(x, ((0, n_pad - n), (0, 0)))
        rows = n_pad // pack
        xw = jnp.reshape(x, (rows, pack * d))                    # contiguous: free
        c1w = jnp.tile(c1f, (1, pack))                           # (1, 128)
        c2w = jnp.tile(c2f, (1, pack))
        lane = jnp.arange(pack * d, dtype=jnp.int32)
        mr = (lane[:, None] // d ==
              jnp.arange(pack, dtype=jnp.int32)[None, :]).astype(jnp.float32)
        mb = mr.T                                                # (pack, 128)

        # Packed-row tile: multiple of 8 sublanes; ~1 MiB per x/out tile default.
        block_p = min(max(block_rows // pack, 8), _round_up(rows, 8))
        block_p = _round_up(block_p, 8)
        grid = (pl.cdiv(rows, block_p),)                         # ragged tail masked

        out = pl.pallas_call(
            _dynamics_init_packed_kernel,
            out_shape=jax.ShapeDtypeStruct((rows, pack * d), io_dtype),
            grid=grid,
            in_specs=[
                pl.BlockSpec(memory_space=pltpu.MemorySpace.SMEM),    # scales
                pl.BlockSpec((1, pack * d), lambda i: (0, 0)),        # c1 tiled
                pl.BlockSpec((1, pack * d), lambda i: (0, 0)),        # c2 tiled
                pl.BlockSpec((pack * d, pack), lambda i: (0, 0)),     # reduce mat
                pl.BlockSpec((pack, pack * d), lambda i: (0, 0)),     # bcast mat
                pl.BlockSpec((block_p, pack * d), lambda i: (i, 0)),  # x tile
            ],
            out_specs=pl.BlockSpec((block_p, pack * d), lambda i: (i, 0)),
            compiler_params=compiler_params,
        )(ab, c1w, c2w, mr, mb, xw)

        out = jnp.reshape(out, (n_pad, d))
        return out if n_pad == n else out[:n]

    # ---- fallback: general d (e.g. d=50), row-wise reduce, masked lanes ----
    # TODO(synk): for d that does not divide 128 the stores stay partially
    # masked; a general lane repack would need a gather, left on this path.
    block_n = min(max(block_rows, 8), _round_up(n, 8))
    block_n = _round_up(block_n, 8)
    grid = (pl.cdiv(n, block_n),)                                # ragged tail masked
    return pl.pallas_call(
        _dynamics_init_rowwise_kernel,
        out_shape=jax.ShapeDtypeStruct((n, d), io_dtype),
        grid=grid,
        in_specs=[
            pl.BlockSpec(memory_space=pltpu.MemorySpace.SMEM),
            pl.BlockSpec((1, d), lambda i: (0, 0)),
            pl.BlockSpec((1, d), lambda i: (0, 0)),
            pl.BlockSpec((block_n, d), lambda i: (i, 0)),
        ],
        out_specs=pl.BlockSpec((block_n, d), lambda i: (i, 0)),
        compiler_params=compiler_params,
    )(ab, c1f, c2f, x)


if __name__ == "__main__":
    D = 32          # feature dim (packs 4 rows per 128-lane vreg row)
    N = 64          # batch rows

    # Module-default parameters: c1 = 0*ones(1,d), c2 = 3*ones(1,d), scales = 1.0
    c1 = jnp.zeros((1, D), dtype=jnp.float32)
    c2 = 3.0 * jnp.ones((1, D), dtype=jnp.float32)
    scale1 = jnp.float32(1.0)
    scale2 = jnp.float32(1.0)

    sqrt_d = math.sqrt(D)
    key = jax.random.PRNGKey(0)
    # Put even rows near c1 and odd rows near c2 so both Gaussian terms are
    # numerically non-trivial (the bumps are narrow at width ~1/sqrt(d)).
    x = jax.random.normal(key, (N, D), dtype=jnp.float32) * (0.2 / sqrt_d)
    x = x + (jnp.arange(N) % 2).astype(jnp.float32)[:, None] * 3.0

    out = dynamics_init_forward(x, c1, c2, scale1, scale2)
    out = jax.block_until_ready(out)

    # Pure-JAX reference mirroring the torch forward exactly.
    u1 = (x - c1) / scale1 * sqrt_d
    u2 = (x - c2) / scale2 * sqrt_d
    e1 = jnp.exp(-jnp.sum(u1 * u1, axis=-1))
    e2 = jnp.exp(-jnp.sum(u2 * u2, axis=-1))
    ref = 2.0 * u1 * (-e1)[:, None] + 2.0 * u2 * (-e2)[:, None]

    assert out.shape == (N, D)
    err = float(jnp.max(jnp.abs(out - ref)))
    assert jnp.allclose(out, ref, atol=2e-5, rtol=2e-5), err

    print("KERNEL_OK")
</pallas_src>

<mosaic_0001>
module attributes {stable_mosaic.version = 11 : i64} {
  func.func @_dynamics_init_packed_kernel(%arg0: i32, %arg1: memref<2xf32, #tpu.memory_space<smem>>, %arg2: memref<1x128xf32, #tpu.memory_space<vmem>>, %arg3: memref<1x128xf32, #tpu.memory_space<vmem>>, %arg4: memref<128x4xf32, #tpu.memory_space<vmem>>, %arg5: memref<4x128xf32, #tpu.memory_space<vmem>>, %arg6: memref<16x128xf32, #tpu.memory_space<vmem>>, %arg7: memref<16x128xf32, #tpu.memory_space<vmem>>) attributes {dimension_semantics = [#tpu.dimension_semantics<parallel>], iteration_bounds = array<i64: 1>, scalar_prefetch = 0 : i64, scratch_operands = 0 : i64, tpu.core_type = #tpu.core_type<tc>, window_params = [{transform_indices = @transform_0, window_bounds = array<i64: 2>}, {pipeline_mode = #tpu.pipeline_mode<synchronous>, transform_indices = @transform_1, window_bounds = array<i64: 1, 128>}, {pipeline_mode = #tpu.pipeline_mode<synchronous>, transform_indices = @transform_2, window_bounds = array<i64: 1, 128>}, {pipeline_mode = #tpu.pipeline_mode<synchronous>, transform_indices = @transform_3, window_bounds = array<i64: 128, 4>}, {pipeline_mode = #tpu.pipeline_mode<synchronous>, transform_indices = @transform_4, window_bounds = array<i64: 4, 128>}, {transform_indices = @transform_5, window_bounds = array<i64: 16, 128>}, {transform_indices = @transform_6, window_bounds = array<i64: 16, 128>}]} {
    %c0 = arith.constant 0 : index
    %c0_0 = arith.constant 0 : index
    %0 = vector.load %arg6[%c0, %c0_0] : memref<16x128xf32, #tpu.memory_space<vmem>>, vector<16x128xf32>
    %c0_1 = arith.constant 0 : index
    %c0_2 = arith.constant 0 : index
    %1 = vector.load %arg2[%c0_1, %c0_2] : memref<1x128xf32, #tpu.memory_space<vmem>>, vector<1x128xf32>
    %2 = vector.broadcast %1 : vector<1x128xf32> to vector<16x128xf32>
    %3 = arith.subf %0, %2 : vector<16x128xf32>
    %c0_3 = arith.constant 0 : index
    %4 = memref.load %arg1[%c0_3] : memref<2xf32, #tpu.memory_space<smem>>
    %5 = vector.broadcast %4 : f32 to vector<16x128xf32>
    %6 = arith.mulf %3, %5 : vector<16x128xf32>
    %c0_4 = arith.constant 0 : index
    %c0_5 = arith.constant 0 : index
    %7 = vector.load %arg3[%c0_4, %c0_5] : memref<1x128xf32, #tpu.memory_space<vmem>>, vector<1x128xf32>
    %8 = vector.broadcast %7 : vector<1x128xf32> to vector<16x128xf32>
    %9 = arith.subf %0, %8 : vector<16x128xf32>
    %c1 = arith.constant 1 : index
    %10 = memref.load %arg1[%c1] : memref<2xf32, #tpu.memory_space<smem>>
    %11 = vector.broadcast %10 : f32 to vector<16x128xf32>
    %12 = arith.mulf %9, %11 : vector<16x128xf32>
    %13 = arith.mulf %6, %6 : vector<16x128xf32>
    %c0_6 = arith.constant 0 : index
    %c0_7 = arith.constant 0 : index
    %14 = vector.load %arg4[%c0_6, %c0_7] : memref<128x4xf32, #tpu.memory_space<vmem>>, vector<128x4xf32>
    %cst = arith.constant dense<0.000000e+00> : vector<16x4xf32>
    %15 = tpu.matmul %13, %14, %cst {dimension_numbers = #tpu.dot_dimension_numbers<[1], [0], [0], [1], [0, 0, 1, 1], [], []>, precision = #tpu.contract_precision<fp32>} : vector<16x128xf32>, vector<128x4xf32>, vector<16x4xf32> -> vector<16x4xf32>
    %16 = arith.mulf %12, %12 : vector<16x128xf32>
    %c0_8 = arith.constant 0 : index
    %c0_9 = arith.constant 0 : index
    %17 = vector.load %arg4[%c0_8, %c0_9] : memref<128x4xf32, #tpu.memory_space<vmem>>, vector<128x4xf32>
    %cst_10 = arith.constant dense<0.000000e+00> : vector<16x4xf32>
    %18 = tpu.matmul %16, %17, %cst_10 {dimension_numbers = #tpu.dot_dimension_numbers<[1], [0], [0], [1], [0, 0, 1, 1], [], []>, precision = #tpu.contract_precision<fp32>} : vector<16x128xf32>, vector<128x4xf32>, vector<16x4xf32> -> vector<16x4xf32>
    %cst_11 = arith.constant 0.000000e+00 : f32
    %19 = vector.broadcast %cst_11 : f32 to vector<16x4xf32>
    %20 = arith.subf %19, %15 : vector<16x4xf32>
    %21 = math.exp %20 : vector<16x4xf32>
    %c0_12 = arith.constant 0 : index
    %c0_13 = arith.constant 0 : index
    %22 = vector.load %arg5[%c0_12, %c0_13] : memref<4x128xf32, #tpu.memory_space<vmem>>, vector<4x128xf32>
    %cst_14 = arith.constant dense<0.000000e+00> : vector<16x128xf32>
    %23 = tpu.matmul %21, %22, %cst_14 {dimension_numbers = #tpu.dot_dimension_numbers<[1], [0], [0], [1], [0, 0, 1, 1], [], []>, precision = #tpu.contract_precision<fp32>} : vector<16x4xf32>, vector<4x128xf32>, vector<16x128xf32> -> vector<16x128xf32>
    %cst_15 = arith.constant 0.000000e+00 : f32
    %24 = vector.broadcast %cst_15 : f32 to vector<16x4xf32>
    %25 = arith.subf %24, %18 : vector<16x4xf32>
    %26 = math.exp %25 : vector<16x4xf32>
    %c0_16 = arith.constant 0 : index
    %c0_17 = arith.constant 0 : index
    %27 = vector.load %arg5[%c0_16, %c0_17] : memref<4x128xf32, #tpu.memory_space<vmem>>, vector<4x128xf32>
    %cst_18 = arith.constant dense<0.000000e+00> : vector<16x128xf32>
    %28 = tpu.matmul %26, %27, %cst_18 {dimension_numbers = #tpu.dot_dimension_numbers<[1], [0], [0], [1], [0, 0, 1, 1], [], []>, precision = #tpu.contract_precision<fp32>} : vector<16x4xf32>, vector<4x128xf32>, vector<16x128xf32> -> vector<16x128xf32>
    %29 = arith.mulf %6, %23 : vector<16x128xf32>
    %30 = arith.mulf %12, %28 : vector<16x128xf32>
    %31 = arith.addf %29, %30 : vector<16x128xf32>
    %cst_19 = arith.constant -2.000000e+00 : f32
    %32 = vector.broadcast %cst_19 : f32 to vector<16x128xf32>
    %33 = arith.mulf %32, %31 : vector<16x128xf32>
    %c0_20 = arith.constant 0 : index
    %c0_21 = arith.constant 0 : index
    %34 = vector.load %arg7[%c0_20, %c0_21] : memref<16x128xf32, #tpu.memory_space<vmem>>, vector<16x128xf32>
    tpu.vector_store %arg7[%c0_20, %c0_21], %33 {strides = array<i32>} : memref<16x128xf32, #tpu.memory_space<vmem>>, vector<16x128xf32>,
    return
  }
  func.func @transform_0(%arg0: i32) -> i32 {
    %c0_i32 = arith.constant 0 : i32
    %c0_i32_0 = arith.constant 0 : i32
    return %c0_i32 : i32
  }
  func.func @transform_1(%arg0: i32) -> (i32, i32) {
    %c0_i32 = arith.constant 0 : i32
    %c0_i32_0 = arith.constant 0 : i32
    %c0_i32_1 = arith.constant 0 : i32
    return %c0_i32, %c0_i32_0 : i32, i32
  }
  func.func @transform_2(%arg0: i32) -> (i32, i32) {
    %c0_i32 = arith.constant 0 : i32
    %c0_i32_0 = arith.constant 0 : i32
    %c0_i32_1 = arith.constant 0 : i32
    return %c0_i32, %c0_i32_0 : i32, i32
  }
  func.func @transform_3(%arg0: i32) -> (i32, i32) {
    %c0_i32 = arith.constant 0 : i32
    %c0_i32_0 = arith.constant 0 : i32
    %c0_i32_1 = arith.constant 0 : i32
    return %c0_i32, %c0_i32_0 : i32, i32
  }
  func.func @transform_4(%arg0: i32) -> (i32, i32) {
    %c0_i32 = arith.constant 0 : i32
    %c0_i32_0 = arith.constant 0 : i32
    %c0_i32_1 = arith.constant 0 : i32
    return %c0_i32, %c0_i32_0 : i32, i32
  }
  func.func @transform_5(%arg0: i32) -> (i32, i32) {
    %c0_i32 = arith.constant 0 : i32
    %c0_i32_0 = arith.constant 0 : i32
    return %arg0, %c0_i32 : i32, i32
  }
  func.func @transform_6(%arg0: i32) -> (i32, i32) {
    %c0_i32 = arith.constant 0 : i32
    %c0_i32_0 = arith.constant 0 : i32
    return %arg0, %c0_i32 : i32, i32
  }
}

</mosaic_0001>

<llo_original>
// kernel: tpu_custom_call.1
$region0: #{tpu_custom_call.1}
  #allocation0 [shape = 'u32[]', space=smem, size = 0x4, offset = 0x4, fixed_abs, tag = 'smem constant byte address 0x4 - core index']
  #allocation1 [shape = 'u32[144,128]{1,0:T(1,128)}', space=vmem, size = 0x12000, scoped, tag = 'internal scratch']
  %s0 = inlined_call_operand.vmem [shape: f32[2], index: 0, kind: input, shape index: {}]
  %s1 = inlined_call_operand.vmem [shape: f32[1,128], index: 1, kind: input, shape index: {}]
  %s2 = inlined_call_operand.vmem [shape: f32[1,128], index: 2, kind: input, shape index: {}]
  %s3 = inlined_call_operand.vmem [shape: f32[128,4], index: 3, kind: input, shape index: {}]
  %s4 = inlined_call_operand.vmem [shape: f32[4,128], index: 4, kind: input, shape index: {}]
  %s5 = inlined_call_operand.vmem [shape: f32[16,128], index: 5, kind: input, shape index: {}]
  %s6 = inlined_call_operand.hbm [shape: f32[16,128], index: 6, kind: output, shape index: {}]
  %s7 = sld [smem:[#allocation0]]
  $region38: #{tpu_custom_call.1} parent=0
    _
  %s9 = ssub.s32 1, %s7
  %s10 = scalar_select 0, %s9, %s7
  $region1: #{tpu_custom_call.1} parent=0
    #allocation2 [shape = 'u8[512]{0}', space=smem, size = 0x200, scoped, tag = 'input window, operand 0, single buffered']
    #allocation3 [shape = 's32[1]{0}', space=sflag, size = 0x4, scoped, tag = 'scoped memory for tpu_custom_call.1']
    #allocation4 [shape = 's32[1]{0}', space=sflag, size = 0x4, scoped, tag = 'scoped memory for tpu_custom_call.1']
    #allocation5 [shape = 'u8[8192]{0}', space=vmem, size = 0x2000, scoped, tag = 'output window, operand 0, single buffered']
    %11 = vsyncpa [#allocation4], 0
    %12 = vsyncpa [#allocation3], 0
    // Predicated region
    $region2: #{tpu_custom_call.1} parent=1 // pred_check
      _
    $region3: #{tpu_custom_call.1} parent=1 // pred_check_branch
      %14 = sbr.rel (0) target = $region5
    $region4: #{tpu_custom_call.1} parent=1 // pred_region
      %s16 = ssub.s32 16, 16
      %17 = vsyncadd [#allocation4], %s16
      %s19 = sshll.u32 %s0, 4
      %s20 = int_to_ptr.vmem [resolvable:$true] %s19
      %22 = dma.vmem_to_smem %s20, 16, [#allocation2], [#allocation4]
    $region5: #{tpu_custom_call.1} parent=1 // pred_fallthru
      _
    // Predicated region
    $region6: #{tpu_custom_call.1} parent=1 // pred_check
      _
    $region7: #{tpu_custom_call.1} parent=1 // pred_check_branch
      %24 = sbr.rel (0) target = $region9
    $region8: #{tpu_custom_call.1} parent=1 // pred_region
      _
    $region9: #{tpu_custom_call.1} parent=1 // pred_fallthru
      _
    // Predicated region
    $region10: #{tpu_custom_call.1} parent=1 // pred_check
      _
    $region11: #{tpu_custom_call.1} parent=1 // pred_check_branch
      %26 = sbr.rel (0) target = $region13
    $region12: #{tpu_custom_call.1} parent=1 // pred_region
      _
    $region13: #{tpu_custom_call.1} parent=1 // pred_fallthru
      _
    // Predicated region
    $region14: #{tpu_custom_call.1} parent=1 // pred_check
      _
    $region15: #{tpu_custom_call.1} parent=1 // pred_check_branch
      %28 = sbr.rel (0) target = $region17
    $region16: #{tpu_custom_call.1} parent=1 // pred_region
      _
    $region17: #{tpu_custom_call.1} parent=1 // pred_fallthru
      _
    // Predicated region
    $region18: #{tpu_custom_call.1} parent=1 // pred_check
      _
    $region19: #{tpu_custom_call.1} parent=1 // pred_check_branch
      %30 = sbr.rel (0) target = $region21
    $region20: #{tpu_custom_call.1} parent=1 // pred_region
      _
    $region21: #{tpu_custom_call.1} parent=1 // pred_fallthru
      _
    // Predicated region
    $region22: #{tpu_custom_call.1} parent=1 // pred_check
      _
    $region23: #{tpu_custom_call.1} parent=1 // pred_check_branch
      %32 = sbr.rel (0) target = $region25
    $region24: #{tpu_custom_call.1} parent=1 // pred_region
      _
    $region25: #{tpu_custom_call.1} parent=1 // pred_fallthru
      _
    // Predicated region
    $region26: #{tpu_custom_call.1} parent=1 // pred_check
      _
    $region27: #{tpu_custom_call.1} parent=1 // pred_check_branch
      %34 = sbr.rel (0) target = $region29
    $region28: #{tpu_custom_call.1} parent=1 // pred_region
      %35 = dma.done [#allocation4], 16
    $region29: #{tpu_custom_call.1} parent=1 // pred_fallthru
      _
    %36 = sfence
    %v37 = vld [vmem:[%s5] sm:$0xff]
    %v38 = vld [vmem:[%s5 + $0x8] sm:$0xff]
    %v39 = vld [vmem:[%s1] sm:$0x1]
    %v41 = vlaneseq
    %v42 = vshrl.u32 %v41, 7
    %v43 = vsub.s32 0, %v42
    %v44 = vrot.slane %v39, %v43
    %v46 = vsub.f32 %v37, %v44
    %v47 = vsub.f32 %v38, %v44
    %s48 = sld [smem:[#allocation2]]
    %v49 = vstv %s48
    %v50 = vmul.f32 %v46, %v49
    %v51 = vmul.f32 %v47, %v49
    %v52 = vld [vmem:[%s2] sm:$0x1]
    %v54 = vlaneseq
    %v55 = vshrl.u32 %v54, 7
    %v56 = vsub.s32 0, %v55
    %v57 = vrot.slane %v52, %v56
    %v59 = vsub.f32 %v37, %v57
    %v60 = vsub.f32 %v38, %v57
    %s61 = sld [smem:[#allocation2 + $0x1]]
    %v62 = vstv %s61
    %v63 = vmul.f32 %v59, %v62
    %v64 = vmul.f32 %v60, %v62
    %v65 = vmul.f32 %v50, %v50
    %v66 = vmul.f32 %v51, %v51
    %v67 = vld [vmem:[%s3] sm:$0xff]
    %v68 = vld [vmem:[%s3 + $0x8] sm:$0xff]
    %v69 = vld [vmem:[%s3 + $0x10] sm:$0xff]
    %v70 = vld [vmem:[%s3 + $0x18] sm:$0xff]
    %v71 = vld [vmem:[%s3 + $0x20] sm:$0xff]
    %v72 = vld [vmem:[%s3 + $0x28] sm:$0xff]
    %v73 = vld [vmem:[%s3 + $0x30] sm:$0xff]
    %v74 = vld [vmem:[%s3 + $0x38] sm:$0xff]
    %v75 = vld [vmem:[%s3 + $0x40] sm:$0xff]
    %v76 = vld [vmem:[%s3 + $0x48] sm:$0xff]
    %v77 = vld [vmem:[%s3 + $0x50] sm:$0xff]
    %v78 = vld [vmem:[%s3 + $0x58] sm:$0xff]
    %v79 = vld [vmem:[%s3 + $0x60] sm:$0xff]
    %v80 = vld [vmem:[%s3 + $0x68] sm:$0xff]
    %v81 = vld [vmem:[%s3 + $0x70] sm:$0xff]
    %v82 = vld [vmem:[%s3 + $0x78] sm:$0xff]
    %83 = vmatprep.subr.mxu0 0.0
    %v84 = vand.u32 %v82, 4294901760
    %85 = vmatpush1.msra.mxu0 %v84
    %86 = vmatprep.subr.mxu0 0.0
    %v87 = vand.u32 %v81, 4294901760
    %88 = vmatpush1.msra.mxu0 %v87
    %89 = vmatprep.subr.mxu0 0.0
    %v90 = vand.u32 %v80, 4294901760
    %91 = vmatpush1.msra.mxu0 %v90
    %92 = vmatprep.subr.mxu0 0.0
    %v93 = vand.u32 %v79, 4294901760
    %94 = vmatpush1.msra.mxu0 %v93
    %95 = vmatprep.subr.mxu0 0.0
    %v96 = vand.u32 %v78, 4294901760
    %97 = vmatpush1.msra.mxu0 %v96
    %98 = vmatprep.subr.mxu0 0.0
    %v99 = vand.u32 %v77, 4294901760
    %100 = vmatpush1.msra.mxu0 %v99
    %101 = vmatprep.subr.mxu0 0.0
    %v102 = vand.u32 %v76, 4294901760
    %103 = vmatpush1.msra.mxu0 %v102
    %104 = vmatprep.subr.mxu0 0.0
    %v105 = vand.u32 %v75, 4294901760
    %106 = vmatpush1.msra.mxu0 %v105
    %107 = vmatprep.subr.mxu0 0.0
    %v108 = vand.u32 %v74, 4294901760
    %109 = vmatpush1.msra.mxu0 %v108
    %110 = vmatprep.subr.mxu0 0.0
    %v111 = vand.u32 %v73, 4294901760
    %112 = vmatpush1.msra.mxu0 %v111
    %113 = vmatprep.subr.mxu0 0.0
    %v114 = vand.u32 %v72, 4294901760
    %115 = vmatpush1.msra.mxu0 %v114
    %116 = vmatprep.subr.mxu0 0.0
    %v117 = vand.u32 %v71, 4294901760
    %118 = vmatpush1.msra.mxu0 %v117
    %119 = vmatprep.subr.mxu0 0.0
    %v120 = vand.u32 %v70, 4294901760
    %121 = vmatpush1.msra.mxu0 %v120
    %122 = vmatprep.subr.mxu0 0.0
    %v123 = vand.u32 %v69, 4294901760
    %124 = vmatpush1.msra.mxu0 %v123
    %125 = vmatprep.subr.mxu0 0.0
    %v126 = vand.u32 %v68, 4294901760
    %127 = vmatpush1.msra.mxu0 %v126
    %128 = vmatprep.subr.mxu0 0.0
    %v129 = vand.u32 %v67, 4294901760
    %130 = vmatpush1.msra.mxu0 %v129
    %131 = vmatprep.subr.mxu0 0.0
    %132 = vmatpush2.msra.mxu0 0.0
    %133 = vmatprep.subr.mxu0 0.0
    %134 = vmatpush2.msra.mxu0 0.0
    %135 = vmatprep.subr.mxu0 0.0
    %136 = vmatpush2.msra.mxu0 0.0
    %137 = vmatprep.subr.mxu0 0.0
    %138 = vmatpush2.msra.mxu0 0.0
    %139 = vmatprep.subr.mxu0 0.0
    %140 = vmatpush2.msra.mxu0 0.0
    %141 = vmatprep.subr.mxu0 0.0
    %142 = vmatpush2.msra.mxu0 0.0
    %143 = vmatprep.subr.mxu0 0.0
    %144 = vmatpush2.msra.mxu0 0.0
    %145 = vmatprep.subr.mxu0 0.0
    %146 = vmatpush2.msra.mxu0 0.0
    %147 = vmatprep.subr.mxu0 0.0
    %148 = vmatpush2.msra.mxu0 0.0
    %149 = vmatprep.subr.mxu0 0.0
    %150 = vmatpush2.msra.mxu0 0.0
    %151 = vmatprep.subr.mxu0 0.0
    %152 = vmatpush2.msra.mxu0 0.0
    %153 = vmatprep.subr.mxu0 0.0
    %154 = vmatpush2.msra.mxu0 0.0
    %155 = vmatprep.subr.mxu0 0.0
    %156 = vmatpush2.msra.mxu0 0.0
    %157 = vmatprep.subr.mxu0 0.0
    %158 = vmatpush2.msra.mxu0 0.0
    %159 = vmatprep.subr.mxu0 0.0
    %160 = vmatpush2.msra.mxu0 0.0
    %161 = vmatprep.subr.mxu0 0.0
    %162 = vmatpush2.msra.mxu0 0.0
    %163 = vmatprep.mubr.f32.mxu0 0.0
    %v164 = vand.u32 %v65, 4294901760
    %v165 = vsub.f32 %v65, %v164
    %v166 = vand.u32 %v165, 4294901760
    %v167 = vsub.f32 %v165, %v166
    %v168 = vand.u32 %v167, 4294901760
    %169 = vmatmul.mubr.f32.gmra.mxu0 %v168
    %v170 = vpop.f32.mrf.mxu0
    %v171 = vadd.f32 0.0, %v170
    %v172 = vpop.f32.mrf.mxu0
    %173 = vmatprep.mubr.f32.mxu0 0.0
    %v174 = vand.u32 %v66, 4294901760
    %v175 = vsub.f32 %v66, %v174
    %v176 = vand.u32 %v175, 4294901760
    %v177 = vsub.f32 %v175, %v176
    %v178 = vand.u32 %v177, 4294901760
    %179 = vmatmul.mubr.f32.gmra.mxu0 %v178
    %v180 = vpop.f32.mrf.mxu0
    %v181 = vadd.f32 0.0, %v180
    %v182 = vpop.f32.mrf.mxu0
    %183 = vdwg.mxu0
    %184 = vmatprep.subr.mxu0 0.0
    %v185 = vand.u32 %v82, 4294901760
    %v186 = vsub.f32 %v82, %v185
    %v187 = vand.u32 %v186, 4294901760
    %v188 = vsub.f32 %v186, %v187
    %v189 = vand.u32 %v188, 4294901760
    %190 = vmatpush1.msra.mxu0 %v189
    %191 = vmatprep.subr.mxu0 0.0
    %v192 = vand.u32 %v81, 4294901760
    %v193 = vsub.f32 %v81, %v192
    %v194 = vand.u32 %v193, 4294901760
    %v195 = vsub.f32 %v193, %v194
    %v196 = vand.u32 %v195, 4294901760
    %197 = vmatpush1.msra.mxu0 %v196
    %198 = vmatprep.subr.mxu0 0.0
    %v199 = vand.u32 %v80, 4294901760
    %v200 = vsub.f32 %v80, %v199
    %v201 = vand.u32 %v200, 4294901760
    %v202 = vsub.f32 %v200, %v201
    %v203 = vand.u32 %v202, 4294901760
    %204 = vmatpush1.msra.mxu0 %v203
    %205 = vmatprep.subr.mxu0 0.0
    %v206 = vand.u32 %v79, 4294901760
    %v207 = vsub.f32 %v79, %v206
    %v208 = vand.u32 %v207, 4294901760
    %v209 = vsub.f32 %v207, %v208
    %v210 = vand.u32 %v209, 4294901760
    %211 = vmatpush1.msra.mxu0 %v210
    %212 = vmatprep.subr.mxu0 0.0
    %v213 = vand.u32 %v78, 4294901760
    %v214 = vsub.f32 %v78, %v213
    %v215 = vand.u32 %v214, 4294901760
    %v216 = vsub.f32 %v214, %v215
    %v217 = vand.u32 %v216, 4294901760
    %218 = vmatpush1.msra.mxu0 %v217
    %219 = vmatprep.subr.mxu0 0.0
    %v220 = vand.u32 %v77, 4294901760
    %v221 = vsub.f32 %v77, %v220
    %v222 = vand.u32 %v221, 4294901760
    %v223 = vsub.f32 %v221, %v222
    %v224 = vand.u32 %v223, 4294901760
    %225 = vmatpush1.msra.mxu0 %v224
    %226 = vmatprep.subr.mxu0 0.0
    %v227 = vand.u32 %v76, 4294901760
    %v228 = vsub.f32 %v76, %v227
    %v229 = vand.u32 %v228, 4294901760
    %v230 = vsub.f32 %v228, %v229
    %v231 = vand.u32 %v230, 4294901760
    %232 = vmatpush1.msra.mxu0 %v231
    %233 = vmatprep.subr.mxu0 0.0
    %v234 = vand.u32 %v75, 4294901760
    %v235 = vsub.f32 %v75, %v234
    %v236 = vand.u32 %v235, 4294901760
    %v237 = vsub.f32 %v235, %v236
    %v238 = vand.u32 %v237, 4294901760
    %239 = vmatpush1.msra.mxu0 %v238
    %240 = vmatprep.subr.mxu0 0.0
    %v241 = vand.u32 %v74, 4294901760
    %v242 = vsub.f32 %v74, %v241
    %v243 = vand.u32 %v242, 4294901760
    %v244 = vsub.f32 %v242, %v243
    %v245 = vand.u32 %v244, 4294901760
    %246 = vmatpush1.msra.mxu0 %v245
    %247 = vmatprep.subr.mxu0 0.0
    %v248 = vand.u32 %v73, 4294901760
    %v249 = vsub.f32 %v73, %v248
    %v250 = vand.u32 %v249, 4294901760
    %v251 = vsub.f32 %v249, %v250
    %v252 = vand.u32 %v251, 4294901760
    %253 = vmatpush1.msra.mxu0 %v252
    %254 = vmatprep.subr.mxu0 0.0
    %v255 = vand.u32 %v72, 4294901760
    %v256 = vsub.f32 %v72, %v255
    %v257 = vand.u32 %v256, 4294901760
    %v258 = vsub.f32 %v256, %v257
    %v259 = vand.u32 %v258, 4294901760
    %260 = vmatpush1.msra.mxu0 %v259
    %261 = vmatprep.subr.mxu0 0.0
    %v262 = vand.u32 %v71, 4294901760
    %v263 = vsub.f32 %v71, %v262
    %v264 = vand.u32 %v263, 4294901760
    %v265 = vsub.f32 %v263, %v264
    %v266 = vand.u32 %v265, 4294901760
    %267 = vmatpush1.msra.mxu0 %v266
    %268 = vmatprep.subr.mxu0 0.0
    %v269 = vand.u32 %v70, 4294901760
    %v270 = vsub.f32 %v70, %v269
    %v271 = vand.u32 %v270, 4294901760
    %v272 = vsub.f32 %v270, %v271
    %v273 = vand.u32 %v272, 4294901760
    %274 = vmatpush1.msra.mxu0 %v273
    %275 = vmatprep.subr.mxu0 0.0
    %v276 = vand.u32 %v69, 4294901760
    %v277 = vsub.f32 %v69, %v276
    %v278 = vand.u32 %v277, 4294901760
    %v279 = vsub.f32 %v277, %v278
    %v280 = vand.u32 %v279, 4294901760
    %281 = vmatpush1.msra.mxu0 %v280
    %282 = vmatprep.subr.mxu0 0.0
    %v283 = vand.u32 %v68, 4294901760
    %v284 = vsub.f32 %v68, %v283
    %v285 = vand.u32 %v284, 4294901760
    %v286 = vsub.f32 %v284, %v285
    %v287 = vand.u32 %v286, 4294901760
    %288 = vmatpush1.msra.mxu0 %v287
    %289 = vmatprep.subr.mxu0 0.0
    %v290 = vand.u32 %v67, 4294901760
    %v291 = vsub.f32 %v67, %v290
    %v292 = vand.u32 %v291, 4294901760
    %v293 = vsub.f32 %v291, %v292
    %v294 = vand.u32 %v293, 4294901760
    %295 = vmatpush1.msra.mxu0 %v294
    %296 = vmatprep.subr.mxu0 0.0
    %297 = vmatpush2.msra.mxu0 0.0
    %298 = vmatprep.subr.mxu0 0.0
    %299 = vmatpush2.msra.mxu0 0.0
    %300 = vmatprep.subr.mxu0 0.0
    %301 = vmatpush2.msra.mxu0 0.0
    %302 = vmatprep.subr.mxu0 0.0
    %303 = vmatpush2.msra.mxu0 0.0
    %304 = vmatprep.subr.mxu0 0.0
    %305 = vmatpush2.msra.mxu0 0.0
    %306 = vmatprep.subr.mxu0 0.0
    %307 = vmatpush2.msra.mxu0 0.0
    %308 = vmatprep.subr.mxu0 0.0
    %309 = vmatpush2.msra.mxu0 0.0
    %310 = vmatprep.subr.mxu0 0.0
    %311 = vmatpush2.msra.mxu0 0.0
    %312 = vmatprep.subr.mxu0 0.0
    %313 = vmatpush2.msra.mxu0 0.0
    %314 = vmatprep.subr.mxu0 0.0
    %315 = vmatpush2.msra.mxu0 0.0
    %316 = vmatprep.subr.mxu0 0.0
    %317 = vmatpush2.msra.mxu0 0.0
    %318 = vmatprep.subr.mxu0 0.0
    %319 = vmatpush2.msra.mxu0 0.0
    %320 = vmatprep.subr.mxu0 0.0
    %321 = vmatpush2.msra.mxu0 0.0
    %322 = vmatprep.subr.mxu0 0.0
    %323 = vmatpush2.msra.mxu0 0.0
    %324 = vmatprep.subr.mxu0 0.0
    %325 = vmatpush2.msra.mxu0 0.0
    %326 = vmatprep.subr.mxu0 0.0
    %327 = vmatpush2.msra.mxu0 0.0
    %328 = vmatprep.mubr.f32.mxu0 0.0
    %v329 = vand.u32 %v65, 4294901760
    %330 = vmatmul.mubr.f32.gmra.mxu0 %v329
    %v331 = vpop.f32.mrf.mxu0
    %v332 = vadd.f32 %v171, %v331
    %v333 = vpop.f32.mrf.mxu0
    %334 = vmatprep.mubr.f32.mxu0 0.0
    %v335 = vand.u32 %v66, 4294901760
    %336 = vmatmul.mubr.f32.gmra.mxu0 %v335
    %v337 = vpop.f32.mrf.mxu0
    %v338 = vadd.f32 %v181, %v337
    %v339 = vpop.f32.mrf.mxu0
    %340 = vdwg.mxu0
    %341 = vmatprep.subr.mxu0 0.0
    %v342 = vand.u32 %v82, 4294901760
    %v343 = vsub.f32 %v82, %v342
    %344 = vmatpush1.msra.mxu0 %v343
    %345 = vmatprep.subr.mxu0 0.0
    %v346 = vand.u32 %v81, 4294901760
    %v347 = vsub.f32 %v81, %v346
    %348 = vmatpush1.msra.mxu0 %v347
    %349 = vmatprep.subr.mxu0 0.0
    %v350 = vand.u32 %v80, 4294901760
    %v351 = vsub.f32 %v80, %v350
    %352 = vmatpush1.msra.mxu0 %v351
    %353 = vmatprep.subr.mxu0 0.0
    %v354 = vand.u32 %v79, 4294901760
    %v355 = vsub.f32 %v79, %v354
    %356 = vmatpush1.msra.mxu0 %v355
    %357 = vmatprep.subr.mxu0 0.0
    %v358 = vand.u32 %v78, 4294901760
    %v359 = vsub.f32 %v78, %v358
    %360 = vmatpush1.msra.mxu0 %v359
    %361 = vmatprep.subr.mxu0 0.0
    %v362 = vand.u32 %v77, 4294901760
    %v363 = vsub.f32 %v77, %v362
    %364 = vmatpush1.msra.mxu0 %v363
    %365 = vmatprep.subr.mxu0 0.0
    %v366 = vand.u32 %v76, 4294901760
    %v367 = vsub.f32 %v76, %v366
    %368 = vmatpush1.msra.mxu0 %v367
    %369 = vmatprep.subr.mxu0 0.0
    %v370 = vand.u32 %v75, 4294901760
    %v371 = vsub.f32 %v75, %v370
    %372 = vmatpush1.msra.mxu0 %v371
    %373 = vmatprep.subr.mxu0 0.0
    %v374 = vand.u32 %v74, 4294901760
    %v375 = vsub.f32 %v74, %v374
    %376 = vmatpush1.msra.mxu0 %v375
    %377 = vmatprep.subr.mxu0 0.0
    %v378 = vand.u32 %v73, 4294901760
    %v379 = vsub.f32 %v73, %v378
    %380 = vmatpush1.msra.mxu0 %v379
    %381 = vmatprep.subr.mxu0 0.0
    %v382 = vand.u32 %v72, 4294901760
    %v383 = vsub.f32 %v72, %v382
    %384 = vmatpush1.msra.mxu0 %v383
    %385 = vmatprep.subr.mxu0 0.0
    %v386 = vand.u32 %v71, 4294901760
    %v387 = vsub.f32 %v71, %v386
    %388 = vmatpush1.msra.mxu0 %v387
    %389 = vmatprep.subr.mxu0 0.0
    %v390 = vand.u32 %v70, 4294901760
    %v391 = vsub.f32 %v70, %v390
    %392 = vmatpush1.msra.mxu0 %v391
    %393 = vmatprep.subr.mxu0 0.0
    %v394 = vand.u32 %v69, 4294901760
    %v395 = vsub.f32 %v69, %v394
    %396 = vmatpush1.msra.mxu0 %v395
    %397 = vmatprep.subr.mxu0 0.0
    %v398 = vand.u32 %v68, 4294901760
    %v399 = vsub.f32 %v68, %v398
    %400 = vmatpush1.msra.mxu0 %v399
    %401 = vmatprep.subr.mxu0 0.0
    %v402 = vand.u32 %v67, 4294901760
    %v403 = vsub.f32 %v67, %v402
    %404 = vmatpush1.msra.mxu0 %v403
    %405 = vmatprep.subr.mxu0 0.0
    %406 = vmatpush2.msra.mxu0 0.0
    %407 = vmatprep.subr.mxu0 0.0
    %408 = vmatpush2.msra.mxu0 0.0
    %409 = vmatprep.subr.mxu0 0.0
    %410 = vmatpush2.msra.mxu0 0.0
    %411 = vmatprep.subr.mxu0 0.0
    %412 = vmatpush2.msra.mxu0 0.0
    %413 = vmatprep.subr.mxu0 0.0
    %414 = vmatpush2.msra.mxu0 0.0
    %415 = vmatprep.subr.mxu0 0.0
    %416 = vmatpush2.msra.mxu0 0.0
    %417 = vmatprep.subr.mxu0 0.0
    %418 = vmatpush2.msra.mxu0 0.0
    %419 = vmatprep.subr.mxu0 0.0
    %420 = vmatpush2.msra.mxu0 0.0
    %421 = vmatprep.subr.mxu0 0.0
    %422 = vmatpush2.msra.mxu0 0.0
    %423 = vmatprep.subr.mxu0 0.0
    %424 = vmatpush2.msra.mxu0 0.0
    %425 = vmatprep.subr.mxu0 0.0
    %426 = vmatpush2.msra.mxu0 0.0
    %427 = vmatprep.subr.mxu0 0.0
    %428 = vmatpush2.msra.mxu0 0.0
    %429 = vmatprep.subr.mxu0 0.0
    %430 = vmatpush2.msra.mxu0 0.0
    %431 = vmatprep.subr.mxu0 0.0
    %432 = vmatpush2.msra.mxu0 0.0
    %433 = vmatprep.subr.mxu0 0.0
    %434 = vmatpush2.msra.mxu0 0.0
    %435 = vmatprep.subr.mxu0 0.0
    %436 = vmatpush2.msra.mxu0 0.0
    %437 = vmatprep.mubr.f32.mxu0 0.0
    %v438 = vand.u32 %v65, 4294901760
    %v439 = vsub.f32 %v65, %v438
    %440 = vmatmul.mubr.f32.gmra.mxu0 %v439
    %v441 = vpop.f32.mrf.mxu0
    %v442 = vadd.f32 %v332, %v441
    %v443 = vpop.f32.mrf.mxu0
    %444 = vmatprep.mubr.f32.mxu0 0.0
    %v445 = vand.u32 %v66, 4294901760
    %v446 = vsub.f32 %v66, %v445
    %447 = vmatmul.mubr.f32.gmra.mxu0 %v446
    %v448 = vpop.f32.mrf.mxu0
    %v449 = vadd.f32 %v338, %v448
    %v450 = vpop.f32.mrf.mxu0
    %451 = vdwg.mxu0
    %452 = vmatprep.subr.mxu0 0.0
    %v453 = vand.u32 %v82, 4294901760
    %454 = vmatpush1.msra.mxu0 %v453
    %455 = vmatprep.subr.mxu0 0.0
    %v456 = vand.u32 %v81, 4294901760
    %457 = vmatpush1.msra.mxu0 %v456
    %458 = vmatprep.subr.mxu0 0.0
    %v459 = vand.u32 %v80, 4294901760
    %460 = vmatpush1.msra.mxu0 %v459
    %461 = vmatprep.subr.mxu0 0.0
    %v462 = vand.u32 %v79, 4294901760
    %463 = vmatpush1.msra.mxu0 %v462
    %464 = vmatprep.subr.mxu0 0.0
    %v465 = vand.u32 %v78, 4294901760
    %466 = vmatpush1.msra.mxu0 %v465
    %467 = vmatprep.subr.mxu0 0.0
    %v468 = vand.u32 %v77, 4294901760
    %469 = vmatpush1.msra.mxu0 %v468
    %470 = vmatprep.subr.mxu0 0.0
    %v471 = vand.u32 %v76, 4294901760
    %472 = vmatpush1.msra.mxu0 %v471
    %473 = vmatprep.subr.mxu0 0.0
    %v474 = vand.u32 %v75, 4294901760
    %475 = vmatpush1.msra.mxu0 %v474
    %476 = vmatprep.subr.mxu0 0.0
    %v477 = vand.u32 %v74, 4294901760
    %478 = vmatpush1.msra.mxu0 %v477
    %479 = vmatprep.subr.mxu0 0.0
    %v480 = vand.u32 %v73, 4294901760
    %481 = vmatpush1.msra.mxu0 %v480
    %482 = vmatprep.subr.mxu0 0.0
    %v483 = vand.u32 %v72, 4294901760
    %484 = vmatpush1.msra.mxu0 %v483
    %485 = vmatprep.subr.mxu0 0.0
    %v486 = vand.u32 %v71, 4294901760
    %487 = vmatpush1.msra.mxu0 %v486
    %488 = vmatprep.subr.mxu0 0.0
    %v489 = vand.u32 %v70, 4294901760
    %490 = vmatpush1.msra.mxu0 %v489
    %491 = vmatprep.subr.mxu0 0.0
    %v492 = vand.u32 %v69, 4294901760
    %493 = vmatpush1.msra.mxu0 %v492
    %494 = vmatprep.subr.mxu0 0.0
    %v495 = vand.u32 %v68, 4294901760
    %496 = vmatpush1.msra.mxu0 %v495
    %497 = vmatprep.subr.mxu0 0.0
    %v498 = vand.u32 %v67, 4294901760
    %499 = vmatpush1.msra.mxu0 %v498
    %500 = vmatprep.subr.mxu0 0.0
    %501 = vmatpush2.msra.mxu0 0.0
    %502 = vmatprep.subr.mxu0 0.0
    %503 = vmatpush2.msra.mxu0 0.0
    %504 = vmatprep.subr.mxu0 0.0
    %505 = vmatpush2.msra.mxu0 0.0
    %506 = vmatprep.subr.mxu0 0.0
    %507 = vmatpush2.msra.mxu0 0.0
    %508 = vmatprep.subr.mxu0 0.0
    %509 = vmatpush2.msra.mxu0 0.0
    %510 = vmatprep.subr.mxu0 0.0
    %511 = vmatpush2.msra.mxu0 0.0
    %512 = vmatprep.subr.mxu0 0.0
    %513 = vmatpush2.msra.mxu0 0.0
    %514 = vmatprep.subr.mxu0 0.0
    %515 = vmatpush2.msra.mxu0 0.0
    %516 = vmatprep.subr.mxu0 0.0
    %517 = vmatpush2.msra.mxu0 0.0
    %518 = vmatprep.subr.mxu0 0.0
    %519 = vmatpush2.msra.mxu0 0.0
    %520 = vmatprep.subr.mxu0 0.0
    %521 = vmatpush2.msra.mxu0 0.0
    %522 = vmatprep.subr.mxu0 0.0
    %523 = vmatpush2.msra.mxu0 0.0
    %524 = vmatprep.subr.mxu0 0.0
    %525 = vmatpush2.msra.mxu0 0.0
    %526 = vmatprep.subr.mxu0 0.0
    %527 = vmatpush2.msra.mxu0 0.0
    %528 = vmatprep.subr.mxu0 0.0
    %529 = vmatpush2.msra.mxu0 0.0
    %530 = vmatprep.subr.mxu0 0.0
    %531 = vmatpush2.msra.mxu0 0.0
    %532 = vmatprep.mubr.f32.mxu0 0.0
    %v533 = vand.u32 %v65, 4294901760
    %v534 = vsub.f32 %v65, %v533
    %v535 = vand.u32 %v534, 4294901760
    %536 = vmatmul.mubr.f32.gmra.mxu0 %v535
    %v537 = vpop.f32.mrf.mxu0
    %v538 = vadd.f32 %v442, %v537
    %v539 = vpop.f32.mrf.mxu0
    %540 = vmatprep.mubr.f32.mxu0 0.0
    %v541 = vand.u32 %v66, 4294901760
    %v542 = vsub.f32 %v66, %v541
    %v543 = vand.u32 %v542, 4294901760
    %544 = vmatmul.mubr.f32.gmra.mxu0 %v543
    %v545 = vpop.f32.mrf.mxu0
    %v546 = vadd.f32 %v449, %v545
    %v547 = vpop.f32.mrf.mxu0
    %548 = vdwg.mxu0
    %549 = vmatprep.subr.mxu0 0.0
    %v550 = vand.u32 %v82, 4294901760
    %v551 = vsub.f32 %v82, %v550
    %v552 = vand.u32 %v551, 4294901760
    %553 = vmatpush1.msra.mxu0 %v552
    %554 = vmatprep.subr.mxu0 0.0
    %v555 = vand.u32 %v81, 4294901760
    %v556 = vsub.f32 %v81, %v555
    %v557 = vand.u32 %v556, 4294901760
    %558 = vmatpush1.msra.mxu0 %v557
    %559 = vmatprep.subr.mxu0 0.0
    %v560 = vand.u32 %v80, 4294901760
    %v561 = vsub.f32 %v80, %v560
    %v562 = vand.u32 %v561, 4294901760
    %563 = vmatpush1.msra.mxu0 %v562
    %564 = vmatprep.subr.mxu0 0.0
    %v565 = vand.u32 %v79, 4294901760
    %v566 = vsub.f32 %v79, %v565
    %v567 = vand.u32 %v566, 4294901760
    %568 = vmatpush1.msra.mxu0 %v567
    %569 = vmatprep.subr.mxu0 0.0
    %v570 = vand.u32 %v78, 4294901760
    %v571 = vsub.f32 %v78, %v570
    %v572 = vand.u32 %v571, 4294901760
    %573 = vmatpush1.msra.mxu0 %v572
    %574 = vmatprep.subr.mxu0 0.0
    %v575 = vand.u32 %v77, 4294901760
    %v576 = vsub.f32 %v77, %v575
    %v577 = vand.u32 %v576, 4294901760
    %578 = vmatpush1.msra.mxu0 %v577
    %579 = vmatprep.subr.mxu0 0.0
    %v580 = vand.u32 %v76, 4294901760
    %v581 = vsub.f32 %v76, %v580
    %v582 = vand.u32 %v581, 4294901760
    %583 = vmatpush1.msra.mxu0 %v582
    %584 = vmatprep.subr.mxu0 0.0
    %v585 = vand.u32 %v75, 4294901760
    %v586 = vsub.f32 %v75, %v585
    %v587 = vand.u32 %v586, 4294901760
    %588 = vmatpush1.msra.mxu0 %v587
    %589 = vmatprep.subr.mxu0 0.0
    %v590 = vand.u32 %v74, 4294901760
    %v591 = vsub.f32 %v74, %v590
    %v592 = vand.u32 %v591, 4294901760
    %593 = vmatpush1.msra.mxu0 %v592
    %594 = vmatprep.subr.mxu0 0.0
    %v595 = vand.u32 %v73, 4294901760
    %v596 = vsub.f32 %v73, %v595
    %v597 = vand.u32 %v596, 4294901760
    %598 = vmatpush1.msra.mxu0 %v597
    %599 = vmatprep.subr.mxu0 0.0
    %v600 = vand.u32 %v72, 4294901760
    %v601 = vsub.f32 %v72, %v600
    %v602 = vand.u32 %v601, 4294901760
    %603 = vmatpush1.msra.mxu0 %v602
    %604 = vmatprep.subr.mxu0 0.0
    %v605 = vand.u32 %v71, 4294901760
    %v606 = vsub.f32 %v71, %v605
    %v607 = vand.u32 %v606, 4294901760
    %608 = vmatpush1.msra.mxu0 %v607
    %609 = vmatprep.subr.mxu0 0.0
    %v610 = vand.u32 %v70, 4294901760
    %v611 = vsub.f32 %v70, %v610
    %v612 = vand.u32 %v611, 4294901760
    %613 = vmatpush1.msra.mxu0 %v612
    %614 = vmatprep.subr.mxu0 0.0
    %v615 = vand.u32 %v69, 4294901760
    %v616 = vsub.f32 %v69, %v615
    %v617 = vand.u32 %v616, 4294901760
    %618 = vmatpush1.msra.mxu0 %v617
    %619 = vmatprep.subr.mxu0 0.0
    %v620 = vand.u32 %v68, 4294901760
    %v621 = vsub.f32 %v68, %v620
    %v622 = vand.u32 %v621, 4294901760
    %623 = vmatpush1.msra.mxu0 %v622
    %624 = vmatprep.subr.mxu0 0.0
    %v625 = vand.u32 %v67, 4294901760
    %v626 = vsub.f32 %v67, %v625
    %v627 = vand.u32 %v626, 4294901760
    %628 = vmatpush1.msra.mxu0 %v627
    %629 = vmatprep.subr.mxu0 0.0
    %630 = vmatpush2.msra.mxu0 0.0
    %631 = vmatprep.subr.mxu0 0.0
    %632 = vmatpush2.msra.mxu0 0.0
    %633 = vmatprep.subr.mxu0 0.0
    %634 = vmatpush2.msra.mxu0 0.0
    %635 = vmatprep.subr.mxu0 0.0
    %636 = vmatpush2.msra.mxu0 0.0
    %637 = vmatprep.subr.mxu0 0.0
    %638 = vmatpush2.msra.mxu0 0.0
    %639 = vmatprep.subr.mxu0 0.0
    %640 = vmatpush2.msra.mxu0 0.0
    %641 = vmatprep.subr.mxu0 0.0
    %642 = vmatpush2.msra.mxu0 0.0
    %643 = vmatprep.subr.mxu0 0.0
    %644 = vmatpush2.msra.mxu0 0.0
    %645 = vmatprep.subr.mxu0 0.0
    %646 = vmatpush2.msra.mxu0 0.0
    %647 = vmatprep.subr.mxu0 0.0
    %648 = vmatpush2.msra.mxu0 0.0
    %649 = vmatprep.subr.mxu0 0.0
    %650 = vmatpush2.msra.mxu0 0.0
    %651 = vmatprep.subr.mxu0 0.0
    %652 = vmatpush2.msra.mxu0 0.0
    %653 = vmatprep.subr.mxu0 0.0
    %654 = vmatpush2.msra.mxu0 0.0
    %655 = vmatprep.subr.mxu0 0.0
    %656 = vmatpush2.msra.mxu0 0.0
    %657 = vmatprep.subr.mxu0 0.0
    %658 = vmatpush2.msra.mxu0 0.0
    %659 = vmatprep.subr.mxu0 0.0
    %660 = vmatpush2.msra.mxu0 0.0
    %661 = vmatprep.mubr.f32.mxu0 0.0
    %v662 = vand.u32 %v65, 4294901760
    %663 = vmatmul.mubr.f32.gmra.mxu0 %v662
    %v664 = vpop.f32.mrf.mxu0
    %v665 = vadd.f32 %v538, %v664
    %v666 = vpop.f32.mrf.mxu0
    %667 = vmatprep.mubr.f32.mxu0 0.0
    %v668 = vand.u32 %v66, 4294901760
    %669 = vmatmul.mubr.f32.gmra.mxu0 %v668
    %v670 = vpop.f32.mrf.mxu0
    %v671 = vadd.f32 %v546, %v670
    %v672 = vpop.f32.mrf.mxu0
    %673 = vdwg.mxu0
    %674 = vmatprep.subr.mxu0 0.0
    %v675 = vand.u32 %v82, 4294901760
    %676 = vmatpush1.msra.mxu0 %v675
    %677 = vmatprep.subr.mxu0 0.0
    %v678 = vand.u32 %v81, 4294901760
    %679 = vmatpush1.msra.mxu0 %v678
    %680 = vmatprep.subr.mxu0 0.0
    %v681 = vand.u32 %v80, 4294901760
    %682 = vmatpush1.msra.mxu0 %v681
    %683 = vmatprep.subr.mxu0 0.0
    %v684 = vand.u32 %v79, 4294901760
    %685 = vmatpush1.msra.mxu0 %v684
    %686 = vmatprep.subr.mxu0 0.0
    %v687 = vand.u32 %v78, 4294901760
    %688 = vmatpush1.msra.mxu0 %v687
    %689 = vmatprep.subr.mxu0 0.0
    %v690 = vand.u32 %v77, 4294901760
    %691 = vmatpush1.msra.mxu0 %v690
    %692 = vmatprep.subr.mxu0 0.0
    %v693 = vand.u32 %v76, 4294901760
    %694 = vmatpush1.msra.mxu0 %v693
    %695 = vmatprep.subr.mxu0 0.0
    %v696 = vand.u32 %v75, 4294901760
    %697 = vmatpush1.msra.mxu0 %v696
    %698 = vmatprep.subr.mxu0 0.0
    %v699 = vand.u32 %v74, 4294901760
    %700 = vmatpush1.msra.mxu0 %v699
    %701 = vmatprep.subr.mxu0 0.0
    %v702 = vand.u32 %v73, 4294901760
    %703 = vmatpush1.msra.mxu0 %v702
    %704 = vmatprep.subr.mxu0 0.0
    %v705 = vand.u32 %v72, 4294901760
    %706 = vmatpush1.msra.mxu0 %v705
    %707 = vmatprep.subr.mxu0 0.0
    %v708 = vand.u32 %v71, 4294901760
    %709 = vmatpush1.msra.mxu0 %v708
    %710 = vmatprep.subr.mxu0 0.0
    %v711 = vand.u32 %v70, 4294901760
    %712 = vmatpush1.msra.mxu0 %v711
    %713 = vmatprep.subr.mxu0 0.0
    %v714 = vand.u32 %v69, 4294901760
    %715 = vmatpush1.msra.mxu0 %v714
    %716 = vmatprep.subr.mxu0 0.0
    %v717 = vand.u32 %v68, 4294901760
    %718 = vmatpush1.msra.mxu0 %v717
    %719 = vmatprep.subr.mxu0 0.0
    %v720 = vand.u32 %v67, 4294901760
    %721 = vmatpush1.msra.mxu0 %v720
    %722 = vmatprep.subr.mxu0 0.0
    %723 = vmatpush2.msra.mxu0 0.0
    %724 = vmatprep.subr.mxu0 0.0
    %725 = vmatpush2.msra.mxu0 0.0
    %726 = vmatprep.subr.mxu0 0.0
    %727 = vmatpush2.msra.mxu0 0.0
    %728 = vmatprep.subr.mxu0 0.0
    %729 = vmatpush2.msra.mxu0 0.0
    %730 = vmatprep.subr.mxu0 0.0
    %731 = vmatpush2.msra.mxu0 0.0
    %732 = vmatprep.subr.mxu0 0.0
    %733 = vmatpush2.msra.mxu0 0.0
    %734 = vmatprep.subr.mxu0 0.0
    %735 = vmatpush2.msra.mxu0 0.0
    %736 = vmatprep.subr.mxu0 0.0
    %737 = vmatpush2.msra.mxu0 0.0
    %738 = vmatprep.subr.mxu0 0.0
    %739 = vmatpush2.msra.mxu0 0.0
    %740 = vmatprep.subr.mxu0 0.0
    %741 = vmatpush2.msra.mxu0 0.0
    %742 = vmatprep.subr.mxu0 0.0
    %743 = vmatpush2.msra.mxu0 0.0
    %744 = vmatprep.subr.mxu0 0.0
    %745 = vmatpush2.msra.mxu0 0.0
    %746 = vmatprep.subr.mxu0 0.0
    %747 = vmatpush2.msra.mxu0 0.0
    %748 = vmatprep.subr.mxu0 0.0
    %749 = vmatpush2.msra.mxu0 0.0
    %750 = vmatprep.subr.mxu0 0.0
    %751 = vmatpush2.msra.mxu0 0.0
    %752 = vmatprep.subr.mxu0 0.0
    %753 = vmatpush2.msra.mxu0 0.0
    %754 = vmatprep.mubr.f32.mxu0 0.0
    %v755 = vand.u32 %v65, 4294901760
    %756 = vmatmul.mubr.f32.gmra.mxu0 %v755
    %v757 = vpop.f32.mrf.mxu0
    %v758 = vadd.f32 %v665, %v757
    %v759 = vpop.f32.mrf.mxu0
    %760 = vmatprep.mubr.f32.mxu0 0.0
    %v761 = vand.u32 %v66, 4294901760
    %762 = vmatmul.mubr.f32.gmra.mxu0 %v761
    %v763 = vpop.f32.mrf.mxu0
    %v764 = vadd.f32 %v671, %v763
    %v765 = vpop.f32.mrf.mxu0
    %766 = vdwg.mxu0
    %v767 = vmul.f32 %v63, %v63
    %v768 = vmul.f32 %v64, %v64
    %769 = vmatprep.subr.mxu0 0.0
    %v770 = vand.u32 %v82, 4294901760
    %771 = vmatpush1.msra.mxu0 %v770
    %772 = vmatprep.subr.mxu0 0.0
    %v773 = vand.u32 %v81, 4294901760
    %774 = vmatpush1.msra.mxu0 %v773
    %775 = vmatprep.subr.mxu0 0.0
    %v776 = vand.u32 %v80, 4294901760
    %777 = vmatpush1.msra.mxu0 %v776
    %778 = vmatprep.subr.mxu0 0.0
    %v779 = vand.u32 %v79, 4294901760
    %780 = vmatpush1.msra.mxu0 %v779
    %781 = vmatprep.subr.mxu0 0.0
    %v782 = vand.u32 %v78, 4294901760
    %783 = vmatpush1.msra.mxu0 %v782
    %784 = vmatprep.subr.mxu0 0.0
    %v785 = vand.u32 %v77, 4294901760
    %786 = vmatpush1.msra.mxu0 %v785
    %787 = vmatprep.subr.mxu0 0.0
    %v788 = vand.u32 %v76, 4294901760
    %789 = vmatpush1.msra.mxu0 %v788
    %790 = vmatprep.subr.mxu0 0.0
    %v791 = vand.u32 %v75, 4294901760
    %792 = vmatpush1.msra.mxu0 %v791
    %793 = vmatprep.subr.mxu0 0.0
    %v794 = vand.u32 %v74, 4294901760
    %795 = vmatpush1.msra.mxu0 %v794
    %796 = vmatprep.subr.mxu0 0.0
    %v797 = vand.u32 %v73, 4294901760
    %798 = vmatpush1.msra.mxu0 %v797
    %799 = vmatprep.subr.mxu0 0.0
    %v800 = vand.u32 %v72, 4294901760
    %801 = vmatpush1.msra.mxu0 %v800
    %802 = vmatprep.subr.mxu0 0.0
    %v803 = vand.u32 %v71, 4294901760
    %804 = vmatpush1.msra.mxu0 %v803
    %805 = vmatprep.subr.mxu0 0.0
    %v806 = vand.u32 %v70, 4294901760
    %807 = vmatpush1.msra.mxu0 %v806
    %808 = vmatprep.subr.mxu0 0.0
    %v809 = vand.u32 %v69, 4294901760
    %810 = vmatpush1.msra.mxu0 %v809
    %811 = vmatprep.subr.mxu0 0.0
    %v812 = vand.u32 %v68, 4294901760
    %813 = vmatpush1.msra.mxu0 %v812
    %814 = vmatprep.subr.mxu0 0.0
    %v815 = vand.u32 %v67, 4294901760
    %816 = vmatpush1.msra.mxu0 %v815
    %817 = vmatprep.subr.mxu0 0.0
    %818 = vmatpush2.msra.mxu0 0.0
    %819 = vmatprep.subr.mxu0 0.0
    %820 = vmatpush2.msra.mxu0 0.0
    %821 = vmatprep.subr.mxu0 0.0
    %822 = vmatpush2.msra.mxu0 0.0
    %823 = vmatprep.subr.mxu0 0.0
    %824 = vmatpush2.msra.mxu0 0.0
    %825 = vmatprep.subr.mxu0 0.0
    %826 = vmatpush2.msra.mxu0 0.0
    %827 = vmatprep.subr.mxu0 0.0
    %828 = vmatpush2.msra.mxu0 0.0
    %829 = vmatprep.subr.mxu0 0.0
    %830 = vmatpush2.msra.mxu0 0.0
    %831 = vmatprep.subr.mxu0 0.0
    %832 = vmatpush2.msra.mxu0 0.0
    %833 = vmatprep.subr.mxu0 0.0
    %834 = vmatpush2.msra.mxu0 0.0
    %835 = vmatprep.subr.mxu0 0.0
    %836 = vmatpush2.msra.mxu0 0.0
    %837 = vmatprep.subr.mxu0 0.0
    %838 = vmatpush2.msra.mxu0 0.0
    %839 = vmatprep.subr.mxu0 0.0
    %840 = vmatpush2.msra.mxu0 0.0
    %841 = vmatprep.subr.mxu0 0.0
    %842 = vmatpush2.msra.mxu0 0.0
    %843 = vmatprep.subr.mxu0 0.0
    %844 = vmatpush2.msra.mxu0 0.0
    %845 = vmatprep.subr.mxu0 0.0
    %846 = vmatpush2.msra.mxu0 0.0
    %847 = vmatprep.subr.mxu0 0.0
    %848 = vmatpush2.msra.mxu0 0.0
    %849 = vmatprep.mubr.f32.mxu0 0.0
    %v850 = vand.u32 %v767, 4294901760
    %v851 = vsub.f32 %v767, %v850
    %v852 = vand.u32 %v851, 4294901760
    %v853 = vsub.f32 %v851, %v852
    %v854 = vand.u32 %v853, 4294901760
    %855 = vmatmul.mubr.f32.gmra.mxu0 %v854
    %v856 = vpop.f32.mrf.mxu0
    %v857 = vadd.f32 0.0, %v856
    %v858 = vpop.f32.mrf.mxu0
    %859 = vmatprep.mubr.f32.mxu0 0.0
    %v860 = vand.u32 %v768, 4294901760
    %v861 = vsub.f32 %v768, %v860
    %v862 = vand.u32 %v861, 4294901760
    %v863 = vsub.f32 %v861, %v862
    %v864 = vand.u32 %v863, 4294901760
    %865 = vmatmul.mubr.f32.gmra.mxu0 %v864
    %v866 = vpop.f32.mrf.mxu0
    %v867 = vadd.f32 0.0, %v866
    %v868 = vpop.f32.mrf.mxu0
    %869 = vdwg.mxu0
    %870 = vmatprep.subr.mxu0 0.0
    %v871 = vand.u32 %v82, 4294901760
    %v872 = vsub.f32 %v82, %v871
    %v873 = vand.u32 %v872, 4294901760
    %v874 = vsub.f32 %v872, %v873
    %v875 = vand.u32 %v874, 4294901760
    %876 = vmatpush1.msra.mxu0 %v875
    %877 = vmatprep.subr.mxu0 0.0
    %v878 = vand.u32 %v81, 4294901760
    %v879 = vsub.f32 %v81, %v878
    %v880 = vand.u32 %v879, 4294901760
    %v881 = vsub.f32 %v879, %v880
    %v882 = vand.u32 %v881, 4294901760
    %883 = vmatpush1.msra.mxu0 %v882
    %884 = vmatprep.subr.mxu0 0.0
    %v885 = vand.u32 %v80, 4294901760
    %v886 = vsub.f32 %v80, %v885
    %v887 = vand.u32 %v886, 4294901760
    %v888 = vsub.f32 %v886, %v887
    %v889 = vand.u32 %v888, 4294901760
    %890 = vmatpush1.msra.mxu0 %v889
    %891 = vmatprep.subr.mxu0 0.0
    %v892 = vand.u32 %v79, 4294901760
    %v893 = vsub.f32 %v79, %v892
    %v894 = vand.u32 %v893, 4294901760
    %v895 = vsub.f32 %v893, %v894
    %v896 = vand.u32 %v895, 4294901760
    %897 = vmatpush1.msra.mxu0 %v896
    %898 = vmatprep.subr.mxu0 0.0
    %v899 = vand.u32 %v78, 4294901760
    %v900 = vsub.f32 %v78, %v899
    %v901 = vand.u32 %v900, 4294901760
    %v902 = vsub.f32 %v900, %v901
    %v903 = vand.u32 %v902, 4294901760
    %904 = vmatpush1.msra.mxu0 %v903
    %905 = vmatprep.subr.mxu0 0.0
    %v906 = vand.u32 %v77, 4294901760
    %v907 = vsub.f32 %v77, %v906
    %v908 = vand.u32 %v907, 4294901760
    %v909 = vsub.f32 %v907, %v908
    %v910 = vand.u32 %v909, 4294901760
    %911 = vmatpush1.msra.mxu0 %v910
    %912 = vmatprep.subr.mxu0 0.0
    %v913 = vand.u32 %v76, 4294901760
    %v914 = vsub.f32 %v76, %v913
    %v915 = vand.u32 %v914, 4294901760
    %v916 = vsub.f32 %v914, %v915
    %v917 = vand.u32 %v916, 4294901760
    %918 = vmatpush1.msra.mxu0 %v917
    %919 = vmatprep.subr.mxu0 0.0
    %v920 = vand.u32 %v75, 4294901760
    %v921 = vsub.f32 %v75, %v920
    %v922 = vand.u32 %v921, 4294901760
    %v923 = vsub.f32 %v921, %v922
    %v924 = vand.u32 %v923, 4294901760
    %925 = vmatpush1.msra.mxu0 %v924
    %926 = vmatprep.subr.mxu0 0.0
    %v927 = vand.u32 %v74, 4294901760
    %v928 = vsub.f32 %v74, %v927
    %v929 = vand.u32 %v928, 4294901760
    %v930 = vsub.f32 %v928, %v929
    %v931 = vand.u32 %v930, 4294901760
    %932 = vmatpush1.msra.mxu0 %v931
    %933 = vmatprep.subr.mxu0 0.0
    %v934 = vand.u32 %v73, 4294901760
    %v935 = vsub.f32 %v73, %v934
    %v936 = vand.u32 %v935, 4294901760
    %v937 = vsub.f32 %v935, %v936
    %v938 = vand.u32 %v937, 4294901760
    %939 = vmatpush1.msra.mxu0 %v938
    %940 = vmatprep.subr.mxu0 0.0
    %v941 = vand.u32 %v72, 4294901760
    %v942 = vsub.f32 %v72, %v941
    %v943 = vand.u32 %v942, 4294901760
    %v944 = vsub.f32 %v942, %v943
    %v945 = vand.u32 %v944, 4294901760
    %946 = vmatpush1.msra.mxu0 %v945
    %947 = vmatprep.subr.mxu0 0.0
    %v948 = vand.u32 %v71, 4294901760
    %v949 = vsub.f32 %v71, %v948
    %v950 = vand.u32 %v949, 4294901760
    %v951 = vsub.f32 %v949, %v950
    %v952 = vand.u32 %v951, 4294901760
    %953 = vmatpush1.msra.mxu0 %v952
    %954 = vmatprep.subr.mxu0 0.0
    %v955 = vand.u32 %v70, 4294901760
    %v956 = vsub.f32 %v70, %v955
    %v957 = vand.u32 %v956, 4294901760
    %v958 = vsub.f32 %v956, %v957
    %v959 = vand.u32 %v958, 4294901760
    %960 = vmatpush1.msra.mxu0 %v959
    %961 = vmatprep.subr.mxu0 0.0
    %v962 = vand.u32 %v69, 4294901760
    %v963 = vsub.f32 %v69, %v962
    %v964 = vand.u32 %v963, 4294901760
    %v965 = vsub.f32 %v963, %v964
    %v966 = vand.u32 %v965, 4294901760
    %967 = vmatpush1.msra.mxu0 %v966
    %968 = vmatprep.subr.mxu0 0.0
    %v969 = vand.u32 %v68, 4294901760
    %v970 = vsub.f32 %v68, %v969
    %v971 = vand.u32 %v970, 4294901760
    %v972 = vsub.f32 %v970, %v971
    %v973 = vand.u32 %v972, 4294901760
    %974 = vmatpush1.msra.mxu0 %v973
    %975 = vmatprep.subr.mxu0 0.0
    %v976 = vand.u32 %v67, 4294901760
    %v977 = vsub.f32 %v67, %v976
    %v978 = vand.u32 %v977, 4294901760
    %v979 = vsub.f32 %v977, %v978
    %v980 = vand.u32 %v979, 4294901760
    %981 = vmatpush1.msra.mxu0 %v980
    %982 = vmatprep.subr.mxu0 0.0
    %983 = vmatpush2.msra.mxu0 0.0
    %984 = vmatprep.subr.mxu0 0.0
    %985 = vmatpush2.msra.mxu0 0.0
    %986 = vmatprep.subr.mxu0 0.0
    %987 = vmatpush2.msra.mxu0 0.0
    %988 = vmatprep.subr.mxu0 0.0
    %989 = vmatpush2.msra.mxu0 0.0
    %990 = vmatprep.subr.mxu0 0.0
    %991 = vmatpush2.msra.mxu0 0.0
    %992 = vmatprep.subr.mxu0 0.0
    %993 = vmatpush2.msra.mxu0 0.0
    %994 = vmatprep.subr.mxu0 0.0
    %995 = vmatpush2.msra.mxu0 0.0
    %996 = vmatprep.subr.mxu0 0.0
    %997 = vmatpush2.msra.mxu0 0.0
    %998 = vmatprep.subr.mxu0 0.0
    %999 = vmatpush2.msra.mxu0 0.0
    %1000 = vmatprep.subr.mxu0 0.0
    %1001 = vmatpush2.msra.mxu0 0.0
    %1002 = vmatprep.subr.mxu0 0.0
    %1003 = vmatpush2.msra.mxu0 0.0
    %1004 = vmatprep.subr.mxu0 0.0
    %1005 = vmatpush2.msra.mxu0 0.0
    %1006 = vmatprep.subr.mxu0 0.0
    %1007 = vmatpush2.msra.mxu0 0.0
    %1008 = vmatprep.subr.mxu0 0.0
    %1009 = vmatpush2.msra.mxu0 0.0
    %1010 = vmatprep.subr.mxu0 0.0
    %1011 = vmatpush2.msra.mxu0 0.0
    %1012 = vmatprep.subr.mxu0 0.0
    %1013 = vmatpush2.msra.mxu0 0.0
    %1014 = vmatprep.mubr.f32.mxu0 0.0
    %v1015 = vand.u32 %v767, 4294901760
    %1016 = vmatmul.mubr.f32.gmra.mxu0 %v1015
    %v1017 = vpop.f32.mrf.mxu0
    %v1018 = vadd.f32 %v857, %v1017
    %v1019 = vpop.f32.mrf.mxu0
    %1020 = vmatprep.mubr.f32.mxu0 0.0
    %v1021 = vand.u32 %v768, 4294901760
    %1022 = vmatmul.mubr.f32.gmra.mxu0 %v1021
    %v1023 = vpop.f32.mrf.mxu0
    %v1024 = vadd.f32 %v867, %v1023
    %v1025 = vpop.f32.mrf.mxu0
    %1026 = vdwg.mxu0
    %1027 = vmatprep.subr.mxu0 0.0
    %v1028 = vand.u32 %v82, 4294901760
    %v1029 = vsub.f32 %v82, %v1028
    %1030 = vmatpush1.msra.mxu0 %v1029
    %1031 = vmatprep.subr.mxu0 0.0
    %v1032 = vand.u32 %v81, 4294901760
    %v1033 = vsub.f32 %v81, %v1032
    %1034 = vmatpush1.msra.mxu0 %v1033
    %1035 = vmatprep.subr.mxu0 0.0
    %v1036 = vand.u32 %v80, 4294901760
    %v1037 = vsub.f32 %v80, %v1036
    %1038 = vmatpush1.msra.mxu0 %v1037
    %1039 = vmatprep.subr.mxu0 0.0
    %v1040 = vand.u32 %v79, 4294901760
    %v1041 = vsub.f32 %v79, %v1040
    %1042 = vmatpush1.msra.mxu0 %v1041
    %1043 = vmatprep.subr.mxu0 0.0
    %v1044 = vand.u32 %v78, 4294901760
    %v1045 = vsub.f32 %v78, %v1044
    %1046 = vmatpush1.msra.mxu0 %v1045
    %1047 = vmatprep.subr.mxu0 0.0
    %v1048 = vand.u32 %v77, 4294901760
    %v1049 = vsub.f32 %v77, %v1048
    %1050 = vmatpush1.msra.mxu0 %v1049
    %1051 = vmatprep.subr.mxu0 0.0
    %v1052 = vand.u32 %v76, 4294901760
    %v1053 = vsub.f32 %v76, %v1052
    %1054 = vmatpush1.msra.mxu0 %v1053
    %1055 = vmatprep.subr.mxu0 0.0
    %v1056 = vand.u32 %v75, 4294901760
    %v1057 = vsub.f32 %v75, %v1056
    %1058 = vmatpush1.msra.mxu0 %v1057
    %1059 = vmatprep.subr.mxu0 0.0
    %v1060 = vand.u32 %v74, 4294901760
    %v1061 = vsub.f32 %v74, %v1060
    %1062 = vmatpush1.msra.mxu0 %v1061
    %1063 = vmatprep.subr.mxu0 0.0
    %v1064 = vand.u32 %v73, 4294901760
    %v1065 = vsub.f32 %v73, %v1064
    %1066 = vmatpush1.msra.mxu0 %v1065
    %1067 = vmatprep.subr.mxu0 0.0
    %v1068 = vand.u32 %v72, 4294901760
    %v1069 = vsub.f32 %v72, %v1068
    %1070 = vmatpush1.msra.mxu0 %v1069
    %1071 = vmatprep.subr.mxu0 0.0
    %v1072 = vand.u32 %v71, 4294901760
    %v1073 = vsub.f32 %v71, %v1072
    %1074 = vmatpush1.msra.mxu0 %v1073
    %1075 = vmatprep.subr.mxu0 0.0
    %v1076 = vand.u32 %v70, 4294901760
    %v1077 = vsub.f32 %v70, %v1076
    %1078 = vmatpush1.msra.mxu0 %v1077
    %1079 = vmatprep.subr.mxu0 0.0
    %v1080 = vand.u32 %v69, 4294901760
    %v1081 = vsub.f32 %v69, %v1080
    %1082 = vmatpush1.msra.mxu0 %v1081
    %1083 = vmatprep.subr.mxu0 0.0
    %v1084 = vand.u32 %v68, 4294901760
    %v1085 = vsub.f32 %v68, %v1084
    %1086 = vmatpush1.msra.mxu0 %v1085
    %1087 = vmatprep.subr.mxu0 0.0
    %v1088 = vand.u32 %v67, 4294901760
    %v1089 = vsub.f32 %v67, %v1088
    %1090 = vmatpush1.msra.mxu0 %v1089
    %1091 = vmatprep.subr.mxu0 0.0
    %1092 = vmatpush2.msra.mxu0 0.0
    %1093 = vmatprep.subr.mxu0 0.0
    %1094 = vmatpush2.msra.mxu0 0.0
    %1095 = vmatprep.subr.mxu0 0.0
    %1096 = vmatpush2.msra.mxu0 0.0
    %1097 = vmatprep.subr.mxu0 0.0
    %1098 = vmatpush2.msra.mxu0 0.0
    %1099 = vmatprep.subr.mxu0 0.0
    %1100 = vmatpush2.msra.mxu0 0.0
    %1101 = vmatprep.subr.mxu0 0.0
    %1102 = vmatpush2.msra.mxu0 0.0
    %1103 = vmatprep.subr.mxu0 0.0
    %1104 = vmatpush2.msra.mxu0 0.0
    %1105 = vmatprep.subr.mxu0 0.0
    %1106 = vmatpush2.msra.mxu0 0.0
    %1107 = vmatprep.subr.mxu0 0.0
    %1108 = vmatpush2.msra.mxu0 0.0
    %1109 = vmatprep.subr.mxu0 0.0
    %1110 = vmatpush2.msra.mxu0 0.0
    %1111 = vmatprep.subr.mxu0 0.0
    %1112 = vmatpush2.msra.mxu0 0.0
    %1113 = vmatprep.subr.mxu0 0.0
    %1114 = vmatpush2.msra.mxu0 0.0
    %1115 = vmatprep.subr.mxu0 0.0
    %1116 = vmatpush2.msra.mxu0 0.0
    %1117 = vmatprep.subr.mxu0 0.0
    %1118 = vmatpush2.msra.mxu0 0.0
    %1119 = vmatprep.subr.mxu0 0.0
    %1120 = vmatpush2.msra.mxu0 0.0
    %1121 = vmatprep.subr.mxu0 0.0
    %1122 = vmatpush2.msra.mxu0 0.0
    %1123 = vmatprep.mubr.f32.mxu0 0.0
    %v1124 = vand.u32 %v767, 4294901760
    %v1125 = vsub.f32 %v767, %v1124
    %1126 = vmatmul.mubr.f32.gmra.mxu0 %v1125
    %v1127 = vpop.f32.mrf.mxu0
    %v1128 = vadd.f32 %v1018, %v1127
    %v1129 = vpop.f32.mrf.mxu0
    %1130 = vmatprep.mubr.f32.mxu0 0.0
    %v1131 = vand.u32 %v768, 4294901760
    %v1132 = vsub.f32 %v768, %v1131
    %1133 = vmatmul.mubr.f32.gmra.mxu0 %v1132
    %v1134 = vpop.f32.mrf.mxu0
    %v1135 = vadd.f32 %v1024, %v1134
    %v1136 = vpop.f32.mrf.mxu0
    %1137 = vdwg.mxu0
    %1138 = vmatprep.subr.mxu0 0.0
    %v1139 = vand.u32 %v82, 4294901760
    %1140 = vmatpush1.msra.mxu0 %v1139
    %1141 = vmatprep.subr.mxu0 0.0
    %v1142 = vand.u32 %v81, 4294901760
    %1143 = vmatpush1.msra.mxu0 %v1142
    %1144 = vmatprep.subr.mxu0 0.0
    %v1145 = vand.u32 %v80, 4294901760
    %1146 = vmatpush1.msra.mxu0 %v1145
    %1147 = vmatprep.subr.mxu0 0.0
    %v1148 = vand.u32 %v79, 4294901760
    %1149 = vmatpush1.msra.mxu0 %v1148
    %1150 = vmatprep.subr.mxu0 0.0
    %v1151 = vand.u32 %v78, 4294901760
    %1152 = vmatpush1.msra.mxu0 %v1151
    %1153 = vmatprep.subr.mxu0 0.0
    %v1154 = vand.u32 %v77, 4294901760
    %1155 = vmatpush1.msra.mxu0 %v1154
    %1156 = vmatprep.subr.mxu0 0.0
    %v1157 = vand.u32 %v76, 4294901760
    %1158 = vmatpush1.msra.mxu0 %v1157
    %1159 = vmatprep.subr.mxu0 0.0
    %v1160 = vand.u32 %v75, 4294901760
    %1161 = vmatpush1.msra.mxu0 %v1160
    %1162 = vmatprep.subr.mxu0 0.0
    %v1163 = vand.u32 %v74, 4294901760
    %1164 = vmatpush1.msra.mxu0 %v1163
    %1165 = vmatprep.subr.mxu0 0.0
    %v1166 = vand.u32 %v73, 4294901760
    %1167 = vmatpush1.msra.mxu0 %v1166
    %1168 = vmatprep.subr.mxu0 0.0
    %v1169 = vand.u32 %v72, 4294901760
    %1170 = vmatpush1.msra.mxu0 %v1169
    %1171 = vmatprep.subr.mxu0 0.0
    %v1172 = vand.u32 %v71, 4294901760
    %1173 = vmatpush1.msra.mxu0 %v1172
    %1174 = vmatprep.subr.mxu0 0.0
    %v1175 = vand.u32 %v70, 4294901760
    %1176 = vmatpush1.msra.mxu0 %v1175
    %1177 = vmatprep.subr.mxu0 0.0
    %v1178 = vand.u32 %v69, 4294901760
    %1179 = vmatpush1.msra.mxu0 %v1178
    %1180 = vmatprep.subr.mxu0 0.0
    %v1181 = vand.u32 %v68, 4294901760
    %1182 = vmatpush1.msra.mxu0 %v1181
    %1183 = vmatprep.subr.mxu0 0.0
    %v1184 = vand.u32 %v67, 4294901760
    %1185 = vmatpush1.msra.mxu0 %v1184
    %1186 = vmatprep.subr.mxu0 0.0
    %1187 = vmatpush2.msra.mxu0 0.0
    %1188 = vmatprep.subr.mxu0 0.0
    %1189 = vmatpush2.msra.mxu0 0.0
    %1190 = vmatprep.subr.mxu0 0.0
    %1191 = vmatpush2.msra.mxu0 0.0
    %1192 = vmatprep.subr.mxu0 0.0
    %1193 = vmatpush2.msra.mxu0 0.0
    %1194 = vmatprep.subr.mxu0 0.0
    %1195 = vmatpush2.msra.mxu0 0.0
    %1196 = vmatprep.subr.mxu0 0.0
    %1197 = vmatpush2.msra.mxu0 0.0
    %1198 = vmatprep.subr.mxu0 0.0
    %1199 = vmatpush2.msra.mxu0 0.0
    %1200 = vmatprep.subr.mxu0 0.0
    %1201 = vmatpush2.msra.mxu0 0.0
    %1202 = vmatprep.subr.mxu0 0.0
    %1203 = vmatpush2.msra.mxu0 0.0
    %1204 = vmatprep.subr.mxu0 0.0
    %1205 = vmatpush2.msra.mxu0 0.0
    %1206 = vmatprep.subr.mxu0 0.0
    %1207 = vmatpush2.msra.mxu0 0.0
    %1208 = vmatprep.subr.mxu0 0.0
    %1209 = vmatpush2.msra.mxu0 0.0
    %1210 = vmatprep.subr.mxu0 0.0
    %1211 = vmatpush2.msra.mxu0 0.0
    %1212 = vmatprep.subr.mxu0 0.0
    %1213 = vmatpush2.msra.mxu0 0.0
    %1214 = vmatprep.subr.mxu0 0.0
    %1215 = vmatpush2.msra.mxu0 0.0
    %1216 = vmatprep.subr.mxu0 0.0
    %1217 = vmatpush2.msra.mxu0 0.0
    %1218 = vmatprep.mubr.f32.mxu0 0.0
    %v1219 = vand.u32 %v767, 4294901760
    %v1220 = vsub.f32 %v767, %v1219
    %v1221 = vand.u32 %v1220, 4294901760
    %1222 = vmatmul.mubr.f32.gmra.mxu0 %v1221
    %v1223 = vpop.f32.mrf.mxu0
    %v1224 = vadd.f32 %v1128, %v1223
    %v1225 = vpop.f32.mrf.mxu0
    %1226 = vmatprep.mubr.f32.mxu0 0.0
    %v1227 = vand.u32 %v768, 4294901760
    %v1228 = vsub.f32 %v768, %v1227
    %v1229 = vand.u32 %v1228, 4294901760
    %1230 = vmatmul.mubr.f32.gmra.mxu0 %v1229
    %v1231 = vpop.f32.mrf.mxu0
    %v1232 = vadd.f32 %v1135, %v1231
    %v1233 = vpop.f32.mrf.mxu0
    %1234 = vdwg.mxu0
    %1235 = vmatprep.subr.mxu0 0.0
    %v1236 = vand.u32 %v82, 4294901760
    %v1237 = vsub.f32 %v82, %v1236
    %v1238 = vand.u32 %v1237, 4294901760
    %1239 = vmatpush1.msra.mxu0 %v1238
    %1240 = vmatprep.subr.mxu0 0.0
    %v1241 = vand.u32 %v81, 4294901760
    %v1242 = vsub.f32 %v81, %v1241
    %v1243 = vand.u32 %v1242, 4294901760
    %1244 = vmatpush1.msra.mxu0 %v1243
    %1245 = vmatprep.subr.mxu0 0.0
    %v1246 = vand.u32 %v80, 4294901760
    %v1247 = vsub.f32 %v80, %v1246
    %v1248 = vand.u32 %v1247, 4294901760
    %1249 = vmatpush1.msra.mxu0 %v1248
    %1250 = vmatprep.subr.mxu0 0.0
    %v1251 = vand.u32 %v79, 4294901760
    %v1252 = vsub.f32 %v79, %v1251
    %v1253 = vand.u32 %v1252, 4294901760
    %1254 = vmatpush1.msra.mxu0 %v1253
    %1255 = vmatprep.subr.mxu0 0.0
    %v1256 = vand.u32 %v78, 4294901760
    %v1257 = vsub.f32 %v78, %v1256
    %v1258 = vand.u32 %v1257, 4294901760
    %1259 = vmatpush1.msra.mxu0 %v1258
    %1260 = vmatprep.subr.mxu0 0.0
    %v1261 = vand.u32 %v77, 4294901760
    %v1262 = vsub.f32 %v77, %v1261
    %v1263 = vand.u32 %v1262, 4294901760
    %1264 = vmatpush1.msra.mxu0 %v1263
    %1265 = vmatprep.subr.mxu0 0.0
    %v1266 = vand.u32 %v76, 4294901760
    %v1267 = vsub.f32 %v76, %v1266
    %v1268 = vand.u32 %v1267, 4294901760
    %1269 = vmatpush1.msra.mxu0 %v1268
    %1270 = vmatprep.subr.mxu0 0.0
    %v1271 = vand.u32 %v75, 4294901760
    %v1272 = vsub.f32 %v75, %v1271
    %v1273 = vand.u32 %v1272, 4294901760
    %1274 = vmatpush1.msra.mxu0 %v1273
    %1275 = vmatprep.subr.mxu0 0.0
    %v1276 = vand.u32 %v74, 4294901760
    %v1277 = vsub.f32 %v74, %v1276
    %v1278 = vand.u32 %v1277, 4294901760
    %1279 = vmatpush1.msra.mxu0 %v1278
    %1280 = vmatprep.subr.mxu0 0.0
    %v1281 = vand.u32 %v73, 4294901760
    %v1282 = vsub.f32 %v73, %v1281
    %v1283 = vand.u32 %v1282, 4294901760
    %1284 = vmatpush1.msra.mxu0 %v1283
    %1285 = vmatprep.subr.mxu0 0.0
    %v1286 = vand.u32 %v72, 4294901760
    %v1287 = vsub.f32 %v72, %v1286
    %v1288 = vand.u32 %v1287, 4294901760
    %1289 = vmatpush1.msra.mxu0 %v1288
    %1290 = vmatprep.subr.mxu0 0.0
    %v1291 = vand.u32 %v71, 4294901760
    %v1292 = vsub.f32 %v71, %v1291
    %v1293 = vand.u32 %v1292, 4294901760
    %1294 = vmatpush1.msra.mxu0 %v1293
    %1295 = vmatprep.subr.mxu0 0.0
    %v1296 = vand.u32 %v70, 4294901760
    %v1297 = vsub.f32 %v70, %v1296
    %v1298 = vand.u32 %v1297, 4294901760
    %1299 = vmatpush1.msra.mxu0 %v1298
    %1300 = vmatprep.subr.mxu0 0.0
    %v1301 = vand.u32 %v69, 4294901760
    %v1302 = vsub.f32 %v69, %v1301
    %v1303 = vand.u32 %v1302, 4294901760
    %1304 = vmatpush1.msra.mxu0 %v1303
    %1305 = vmatprep.subr.mxu0 0.0
    %v1306 = vand.u32 %v68, 4294901760
    %v1307 = vsub.f32 %v68, %v1306
    %v1308 = vand.u32 %v1307, 4294901760
    %1309 = vmatpush1.msra.mxu0 %v1308
    %1310 = vmatprep.subr.mxu0 0.0
    %v1311 = vand.u32 %v67, 4294901760
    %v1312 = vsub.f32 %v67, %v1311
    %v1313 = vand.u32 %v1312, 4294901760
    %1314 = vmatpush1.msra.mxu0 %v1313
    %1315 = vmatprep.subr.mxu0 0.0
    %1316 = vmatpush2.msra.mxu0 0.0
    %1317 = vmatprep.subr.mxu0 0.0
    %1318 = vmatpush2.msra.mxu0 0.0
    %1319 = vmatprep.subr.mxu0 0.0
    %1320 = vmatpush2.msra.mxu0 0.0
    %1321 = vmatprep.subr.mxu0 0.0
    %1322 = vmatpush2.msra.mxu0 0.0
    %1323 = vmatprep.subr.mxu0 0.0
    %1324 = vmatpush2.msra.mxu0 0.0
    %1325 = vmatprep.subr.mxu0 0.0
    %1326 = vmatpush2.msra.mxu0 0.0
    %1327 = vmatprep.subr.mxu0 0.0
    %1328 = vmatpush2.msra.mxu0 0.0
    %1329 = vmatprep.subr.mxu0 0.0
    %1330 = vmatpush2.msra.mxu0 0.0
    %1331 = vmatprep.subr.mxu0 0.0
    %1332 = vmatpush2.msra.mxu0 0.0
    %1333 = vmatprep.subr.mxu0 0.0
    %1334 = vmatpush2.msra.mxu0 0.0
    %1335 = vmatprep.subr.mxu0 0.0
    %1336 = vmatpush2.msra.mxu0 0.0
    %1337 = vmatprep.subr.mxu0 0.0
    %1338 = vmatpush2.msra.mxu0 0.0
    %1339 = vmatprep.subr.mxu0 0.0
    %1340 = vmatpush2.msra.mxu0 0.0
    %1341 = vmatprep.subr.mxu0 0.0
    %1342 = vmatpush2.msra.mxu0 0.0
    %1343 = vmatprep.subr.mxu0 0.0
    %1344 = vmatpush2.msra.mxu0 0.0
    %1345 = vmatprep.subr.mxu0 0.0
    %1346 = vmatpush2.msra.mxu0 0.0
    %1347 = vmatprep.mubr.f32.mxu0 0.0
    %v1348 = vand.u32 %v767, 4294901760
    %1349 = vmatmul.mubr.f32.gmra.mxu0 %v1348
    %v1350 = vpop.f32.mrf.mxu0
    %v1351 = vadd.f32 %v1224, %v1350
    %v1352 = vpop.f32.mrf.mxu0
    %1353 = vmatprep.mubr.f32.mxu0 0.0
    %v1354 = vand.u32 %v768, 4294901760
    %1355 = vmatmul.mubr.f32.gmra.mxu0 %v1354
    %v1356 = vpop.f32.mrf.mxu0
    %v1357 = vadd.f32 %v1232, %v1356
    %v1358 = vpop.f32.mrf.mxu0
    %1359 = vdwg.mxu0
    %1360 = vmatprep.subr.mxu0 0.0
    %v1361 = vand.u32 %v82, 4294901760
    %1362 = vmatpush1.msra.mxu0 %v1361
    %1363 = vmatprep.subr.mxu0 0.0
    %v1364 = vand.u32 %v81, 4294901760
    %1365 = vmatpush1.msra.mxu0 %v1364
    %1366 = vmatprep.subr.mxu0 0.0
    %v1367 = vand.u32 %v80, 4294901760
    %1368 = vmatpush1.msra.mxu0 %v1367
    %1369 = vmatprep.subr.mxu0 0.0
    %v1370 = vand.u32 %v79, 4294901760
    %1371 = vmatpush1.msra.mxu0 %v1370
    %1372 = vmatprep.subr.mxu0 0.0
    %v1373 = vand.u32 %v78, 4294901760
    %1374 = vmatpush1.msra.mxu0 %v1373
    %1375 = vmatprep.subr.mxu0 0.0
    %v1376 = vand.u32 %v77, 4294901760
    %1377 = vmatpush1.msra.mxu0 %v1376
    %1378 = vmatprep.subr.mxu0 0.0
    %v1379 = vand.u32 %v76, 4294901760
    %1380 = vmatpush1.msra.mxu0 %v1379
    %1381 = vmatprep.subr.mxu0 0.0
    %v1382 = vand.u32 %v75, 4294901760
    %1383 = vmatpush1.msra.mxu0 %v1382
    %1384 = vmatprep.subr.mxu0 0.0
    %v1385 = vand.u32 %v74, 4294901760
    %1386 = vmatpush1.msra.mxu0 %v1385
    %1387 = vmatprep.subr.mxu0 0.0
    %v1388 = vand.u32 %v73, 4294901760
    %1389 = vmatpush1.msra.mxu0 %v1388
    %1390 = vmatprep.subr.mxu0 0.0
    %v1391 = vand.u32 %v72, 4294901760
    %1392 = vmatpush1.msra.mxu0 %v1391
    %1393 = vmatprep.subr.mxu0 0.0
    %v1394 = vand.u32 %v71, 4294901760
    %1395 = vmatpush1.msra.mxu0 %v1394
    %1396 = vmatprep.subr.mxu0 0.0
    %v1397 = vand.u32 %v70, 4294901760
    %1398 = vmatpush1.msra.mxu0 %v1397
    %1399 = vmatprep.subr.mxu0 0.0
    %v1400 = vand.u32 %v69, 4294901760
    %1401 = vmatpush1.msra.mxu0 %v1400
    %1402 = vmatprep.subr.mxu0 0.0
    %v1403 = vand.u32 %v68, 4294901760
    %1404 = vmatpush1.msra.mxu0 %v1403
    %1405 = vmatprep.subr.mxu0 0.0
    %v1406 = vand.u32 %v67, 4294901760
    %1407 = vmatpush1.msra.mxu0 %v1406
    %1408 = vmatprep.subr.mxu0 0.0
    %1409 = vmatpush2.msra.mxu0 0.0
    %1410 = vmatprep.subr.mxu0 0.0
    %1411 = vmatpush2.msra.mxu0 0.0
    %1412 = vmatprep.subr.mxu0 0.0
    %1413 = vmatpush2.msra.mxu0 0.0
    %1414 = vmatprep.subr.mxu0 0.0
    %1415 = vmatpush2.msra.mxu0 0.0
    %1416 = vmatprep.subr.mxu0 0.0
    %1417 = vmatpush2.msra.mxu0 0.0
    %1418 = vmatprep.subr.mxu0 0.0
    %1419 = vmatpush2.msra.mxu0 0.0
    %1420 = vmatprep.subr.mxu0 0.0
    %1421 = vmatpush2.msra.mxu0 0.0
    %1422 = vmatprep.subr.mxu0 0.0
    %1423 = vmatpush2.msra.mxu0 0.0
    %1424 = vmatprep.subr.mxu0 0.0
    %1425 = vmatpush2.msra.mxu0 0.0
    %1426 = vmatprep.subr.mxu0 0.0
    %1427 = vmatpush2.msra.mxu0 0.0
    %1428 = vmatprep.subr.mxu0 0.0
    %1429 = vmatpush2.msra.mxu0 0.0
    %1430 = vmatprep.subr.mxu0 0.0
    %1431 = vmatpush2.msra.mxu0 0.0
    %1432 = vmatprep.subr.mxu0 0.0
    %1433 = vmatpush2.msra.mxu0 0.0
    %1434 = vmatprep.subr.mxu0 0.0
    %1435 = vmatpush2.msra.mxu0 0.0
    %1436 = vmatprep.subr.mxu0 0.0
    %1437 = vmatpush2.msra.mxu0 0.0
    %1438 = vmatprep.subr.mxu0 0.0
    %1439 = vmatpush2.msra.mxu0 0.0
    %1440 = vmatprep.mubr.f32.mxu0 0.0
    %v1441 = vand.u32 %v767, 4294901760
    %1442 = vmatmul.mubr.f32.gmra.mxu0 %v1441
    %v1443 = vpop.f32.mrf.mxu0
    %v1444 = vadd.f32 %v1351, %v1443
    %v1445 = vpop.f32.mrf.mxu0
    %1446 = vmatprep.mubr.f32.mxu0 0.0
    %v1447 = vand.u32 %v768, 4294901760
    %1448 = vmatmul.mubr.f32.gmra.mxu0 %v1447
    %v1449 = vpop.f32.mrf.mxu0
    %v1450 = vadd.f32 %v1357, %v1449
    %v1451 = vpop.f32.mrf.mxu0
    %1452 = vdwg.mxu0
    %v1453 = vsub.f32 0.0, %v758
    %v1454 = vsub.f32 0.0, %v764
    %v1455 = vmul.f32 %v1453, 1.442695
    %v1456 = vpow.pop %v1455
    %v1457 = vmul.f32 %v1454, 1.442695
    %v1458 = vpow.pop %v1457
    %v1459 = vld [vmem:[%s4] sm:$0xf]
    %vm1460 = vcmask 31744
    %v1462 = vsel %vm1460, %v1456, 0
    %v1465 = vsel %vm1460, %v1458, 0
    %vm1467 = vcmask 1043456
    %v1469 = vsel %vm1467, %v1459, 0
    %1471 = vmatprep.subr.mxu0 0.0
    %1472 = vmatpush1.msra.mxu0 0.0
    %1473 = vmatprep.subr.mxu0 0.0
    %1474 = vmatpush1.msra.mxu0 0.0
    %1475 = vmatprep.subr.mxu0 0.0
    %1476 = vmatpush1.msra.mxu0 0.0
    %1477 = vmatprep.subr.mxu0 0.0
    %1478 = vmatpush1.msra.mxu0 0.0
    %1479 = vmatprep.subr.mxu0 0.0
    %1480 = vmatpush1.msra.mxu0 0.0
    %1481 = vmatprep.subr.mxu0 0.0
    %1482 = vmatpush1.msra.mxu0 0.0
    %1483 = vmatprep.subr.mxu0 0.0
    %1484 = vmatpush1.msra.mxu0 0.0
    %1485 = vmatprep.subr.mxu0 0.0
    %1486 = vmatpush1.msra.mxu0 0.0
    %1487 = vmatprep.subr.mxu0 0.0
    %1488 = vmatpush1.msra.mxu0 0.0
    %1489 = vmatprep.subr.mxu0 0.0
    %1490 = vmatpush1.msra.mxu0 0.0
    %1491 = vmatprep.subr.mxu0 0.0
    %1492 = vmatpush1.msra.mxu0 0.0
    %1493 = vmatprep.subr.mxu0 0.0
    %1494 = vmatpush1.msra.mxu0 0.0
    %1495 = vmatprep.subr.mxu0 0.0
    %1496 = vmatpush1.msra.mxu0 0.0
    %1497 = vmatprep.subr.mxu0 0.0
    %1498 = vmatpush1.msra.mxu0 0.0
    %1499 = vmatprep.subr.mxu0 0.0
    %1500 = vmatpush1.msra.mxu0 0.0
    %1501 = vmatprep.subr.mxu0 0.0
    %v1502 = vand.u32 %v1469, 4294901760
    %1503 = vmatpush1.msra.mxu0 %v1502
    %1504 = vmatprep.subr.mxu0 0.0
    %1505 = vmatpush2.msra.mxu0 0.0
    %1506 = vmatprep.subr.mxu0 0.0
    %1507 = vmatpush2.msra.mxu0 0.0
    %1508 = vmatprep.subr.mxu0 0.0
    %1509 = vmatpush2.msra.mxu0 0.0
    %1510 = vmatprep.subr.mxu0 0.0
    %1511 = vmatpush2.msra.mxu0 0.0
    %1512 = vmatprep.subr.mxu0 0.0
    %1513 = vmatpush2.msra.mxu0 0.0
    %1514 = vmatprep.subr.mxu0 0.0
    %1515 = vmatpush2.msra.mxu0 0.0
    %1516 = vmatprep.subr.mxu0 0.0
    %1517 = vmatpush2.msra.mxu0 0.0
    %1518 = vmatprep.subr.mxu0 0.0
    %1519 = vmatpush2.msra.mxu0 0.0
    %1520 = vmatprep.subr.mxu0 0.0
    %1521 = vmatpush2.msra.mxu0 0.0
    %1522 = vmatprep.subr.mxu0 0.0
    %1523 = vmatpush2.msra.mxu0 0.0
    %1524 = vmatprep.subr.mxu0 0.0
    %1525 = vmatpush2.msra.mxu0 0.0
    %1526 = vmatprep.subr.mxu0 0.0
    %1527 = vmatpush2.msra.mxu0 0.0
    %1528 = vmatprep.subr.mxu0 0.0
    %1529 = vmatpush2.msra.mxu0 0.0
    %1530 = vmatprep.subr.mxu0 0.0
    %1531 = vmatpush2.msra.mxu0 0.0
    %1532 = vmatprep.subr.mxu0 0.0
    %1533 = vmatpush2.msra.mxu0 0.0
    %1534 = vmatprep.subr.mxu0 0.0
    %1535 = vmatpush2.msra.mxu0 0.0
    %1536 = vmatprep.mubr.f32.mxu0 0.0
    %v1537 = vand.u32 %v1462, 4294901760
    %v1538 = vsub.f32 %v1462, %v1537
    %v1539 = vand.u32 %v1538, 4294901760
    %v1540 = vsub.f32 %v1538, %v1539
    %v1541 = vand.u32 %v1540, 4294901760
    %1542 = vmatmul.mubr.f32.gmra.mxu0 %v1541
    %v1543 = vpop.f32.mrf.mxu0
    %v1544 = vadd.f32 0.0, %v1543
    %v1545 = vpop.f32.mrf.mxu0
    %1546 = vmatprep.mubr.f32.mxu0 0.0
    %v1547 = vand.u32 %v1465, 4294901760
    %v1548 = vsub.f32 %v1465, %v1547
    %v1549 = vand.u32 %v1548, 4294901760
    %v1550 = vsub.f32 %v1548, %v1549
    %v1551 = vand.u32 %v1550, 4294901760
    %1552 = vmatmul.mubr.f32.gmra.mxu0 %v1551
    %v1553 = vpop.f32.mrf.mxu0
    %v1554 = vadd.f32 0.0, %v1553
    %v1555 = vpop.f32.mrf.mxu0
    %1556 = vdwg.mxu0
    %1557 = vmatprep.subr.mxu0 0.0
    %1558 = vmatpush1.msra.mxu0 0.0
    %1559 = vmatprep.subr.mxu0 0.0
    %1560 = vmatpush1.msra.mxu0 0.0
    %1561 = vmatprep.subr.mxu0 0.0
    %1562 = vmatpush1.msra.mxu0 0.0
    %1563 = vmatprep.subr.mxu0 0.0
    %1564 = vmatpush1.msra.mxu0 0.0
    %1565 = vmatprep.subr.mxu0 0.0
    %1566 = vmatpush1.msra.mxu0 0.0
    %1567 = vmatprep.subr.mxu0 0.0
    %1568 = vmatpush1.msra.mxu0 0.0
    %1569 = vmatprep.subr.mxu0 0.0
    %1570 = vmatpush1.msra.mxu0 0.0
    %1571 = vmatprep.subr.mxu0 0.0
    %1572 = vmatpush1.msra.mxu0 0.0
    %1573 = vmatprep.subr.mxu0 0.0
    %1574 = vmatpush1.msra.mxu0 0.0
    %1575 = vmatprep.subr.mxu0 0.0
    %1576 = vmatpush1.msra.mxu0 0.0
    %1577 = vmatprep.subr.mxu0 0.0
    %1578 = vmatpush1.msra.mxu0 0.0
    %1579 = vmatprep.subr.mxu0 0.0
    %1580 = vmatpush1.msra.mxu0 0.0
    %1581 = vmatprep.subr.mxu0 0.0
    %1582 = vmatpush1.msra.mxu0 0.0
    %1583 = vmatprep.subr.mxu0 0.0
    %1584 = vmatpush1.msra.mxu0 0.0
    %1585 = vmatprep.subr.mxu0 0.0
    %1586 = vmatpush1.msra.mxu0 0.0
    %1587 = vmatprep.subr.mxu0 0.0
    %v1588 = vand.u32 %v1469, 4294901760
    %v1589 = vsub.f32 %v1469, %v1588
    %v1590 = vand.u32 %v1589, 4294901760
    %v1591 = vsub.f32 %v1589, %v1590
    %v1592 = vand.u32 %v1591, 4294901760
    %1593 = vmatpush1.msra.mxu0 %v1592
    %1594 = vmatprep.subr.mxu0 0.0
    %1595 = vmatpush2.msra.mxu0 0.0
    %1596 = vmatprep.subr.mxu0 0.0
    %1597 = vmatpush2.msra.mxu0 0.0
    %1598 = vmatprep.subr.mxu0 0.0
    %1599 = vmatpush2.msra.mxu0 0.0
    %1600 = vmatprep.subr.mxu0 0.0
    %1601 = vmatpush2.msra.mxu0 0.0
    %1602 = vmatprep.subr.mxu0 0.0
    %1603 = vmatpush2.msra.mxu0 0.0
    %1604 = vmatprep.subr.mxu0 0.0
    %1605 = vmatpush2.msra.mxu0 0.0
    %1606 = vmatprep.subr.mxu0 0.0
    %1607 = vmatpush2.msra.mxu0 0.0
    %1608 = vmatprep.subr.mxu0 0.0
    %1609 = vmatpush2.msra.mxu0 0.0
    %1610 = vmatprep.subr.mxu0 0.0
    %1611 = vmatpush2.msra.mxu0 0.0
    %1612 = vmatprep.subr.mxu0 0.0
    %1613 = vmatpush2.msra.mxu0 0.0
    %1614 = vmatprep.subr.mxu0 0.0
    %1615 = vmatpush2.msra.mxu0 0.0
    %1616 = vmatprep.subr.mxu0 0.0
    %1617 = vmatpush2.msra.mxu0 0.0
    %1618 = vmatprep.subr.mxu0 0.0
    %1619 = vmatpush2.msra.mxu0 0.0
    %1620 = vmatprep.subr.mxu0 0.0
    %1621 = vmatpush2.msra.mxu0 0.0
    %1622 = vmatprep.subr.mxu0 0.0
    %1623 = vmatpush2.msra.mxu0 0.0
    %1624 = vmatprep.subr.mxu0 0.0
    %1625 = vmatpush2.msra.mxu0 0.0
    %1626 = vmatprep.mubr.f32.mxu0 0.0
    %v1627 = vand.u32 %v1462, 4294901760
    %1628 = vmatmul.mubr.f32.gmra.mxu0 %v1627
    %v1629 = vpop.f32.mrf.mxu0
    %v1630 = vadd.f32 %v1544, %v1629
    %v1631 = vpop.f32.mrf.mxu0
    %1632 = vmatprep.mubr.f32.mxu0 0.0
    %v1633 = vand.u32 %v1465, 4294901760
    %1634 = vmatmul.mubr.f32.gmra.mxu0 %v1633
    %v1635 = vpop.f32.mrf.mxu0
    %v1636 = vadd.f32 %v1554, %v1635
    %v1637 = vpop.f32.mrf.mxu0
    %1638 = vdwg.mxu0
    %1639 = vmatprep.subr.mxu0 0.0
    %1640 = vmatpush1.msra.mxu0 0.0
    %1641 = vmatprep.subr.mxu0 0.0
    %1642 = vmatpush1.msra.mxu0 0.0
    %1643 = vmatprep.subr.mxu0 0.0
    %1644 = vmatpush1.msra.mxu0 0.0
    %1645 = vmatprep.subr.mxu0 0.0
    %1646 = vmatpush1.msra.mxu0 0.0
    %1647 = vmatprep.subr.mxu0 0.0
    %1648 = vmatpush1.msra.mxu0 0.0
    %1649 = vmatprep.subr.mxu0 0.0
    %1650 = vmatpush1.msra.mxu0 0.0
    %1651 = vmatprep.subr.mxu0 0.0
    %1652 = vmatpush1.msra.mxu0 0.0
    %1653 = vmatprep.subr.mxu0 0.0
    %1654 = vmatpush1.msra.mxu0 0.0
    %1655 = vmatprep.subr.mxu0 0.0
    %1656 = vmatpush1.msra.mxu0 0.0
    %1657 = vmatprep.subr.mxu0 0.0
    %1658 = vmatpush1.msra.mxu0 0.0
    %1659 = vmatprep.subr.mxu0 0.0
    %1660 = vmatpush1.msra.mxu0 0.0
    %1661 = vmatprep.subr.mxu0 0.0
    %1662 = vmatpush1.msra.mxu0 0.0
    %1663 = vmatprep.subr.mxu0 0.0
    %1664 = vmatpush1.msra.mxu0 0.0
    %1665 = vmatprep.subr.mxu0 0.0
    %1666 = vmatpush1.msra.mxu0 0.0
    %1667 = vmatprep.subr.mxu0 0.0
    %1668 = vmatpush1.msra.mxu0 0.0
    %1669 = vmatprep.subr.mxu0 0.0
    %v1670 = vand.u32 %v1469, 4294901760
    %v1671 = vsub.f32 %v1469, %v1670
    %1672 = vmatpush1.msra.mxu0 %v1671
    %1673 = vmatprep.subr.mxu0 0.0
    %1674 = vmatpush2.msra.mxu0 0.0
    %1675 = vmatprep.subr.mxu0 0.0
    %1676 = vmatpush2.msra.mxu0 0.0
    %1677 = vmatprep.subr.mxu0 0.0
    %1678 = vmatpush2.msra.mxu0 0.0
    %1679 = vmatprep.subr.mxu0 0.0
    %1680 = vmatpush2.msra.mxu0 0.0
    %1681 = vmatprep.subr.mxu0 0.0
    %1682 = vmatpush2.msra.mxu0 0.0
    %1683 = vmatprep.subr.mxu0 0.0
    %1684 = vmatpush2.msra.mxu0 0.0
    %1685 = vmatprep.subr.mxu0 0.0
    %1686 = vmatpush2.msra.mxu0 0.0
    %1687 = vmatprep.subr.mxu0 0.0
    %1688 = vmatpush2.msra.mxu0 0.0
    %1689 = vmatprep.subr.mxu0 0.0
    %1690 = vmatpush2.msra.mxu0 0.0
    %1691 = vmatprep.subr.mxu0 0.0
    %1692 = vmatpush2.msra.mxu0 0.0
    %1693 = vmatprep.subr.mxu0 0.0
    %1694 = vmatpush2.msra.mxu0 0.0
    %1695 = vmatprep.subr.mxu0 0.0
    %1696 = vmatpush2.msra.mxu0 0.0
    %1697 = vmatprep.subr.mxu0 0.0
    %1698 = vmatpush2.msra.mxu0 0.0
    %1699 = vmatprep.subr.mxu0 0.0
    %1700 = vmatpush2.msra.mxu0 0.0
    %1701 = vmatprep.subr.mxu0 0.0
    %1702 = vmatpush2.msra.mxu0 0.0
    %1703 = vmatprep.subr.mxu0 0.0
    %1704 = vmatpush2.msra.mxu0 0.0
    %1705 = vmatprep.mubr.f32.mxu0 0.0
    %v1706 = vand.u32 %v1462, 4294901760
    %v1707 = vsub.f32 %v1462, %v1706
    %1708 = vmatmul.mubr.f32.gmra.mxu0 %v1707
    %v1709 = vpop.f32.mrf.mxu0
    %v1710 = vadd.f32 %v1630, %v1709
    %v1711 = vpop.f32.mrf.mxu0
    %1712 = vmatprep.mubr.f32.mxu0 0.0
    %v1713 = vand.u32 %v1465, 4294901760
    %v1714 = vsub.f32 %v1465, %v1713
    %1715 = vmatmul.mubr.f32.gmra.mxu0 %v1714
    %v1716 = vpop.f32.mrf.mxu0
    %v1717 = vadd.f32 %v1636, %v1716
    %v1718 = vpop.f32.mrf.mxu0
    %1719 = vdwg.mxu0
    %1720 = vmatprep.subr.mxu0 0.0
    %1721 = vmatpush1.msra.mxu0 0.0
    %1722 = vmatprep.subr.mxu0 0.0
    %1723 = vmatpush1.msra.mxu0 0.0
    %1724 = vmatprep.subr.mxu0 0.0
    %1725 = vmatpush1.msra.mxu0 0.0
    %1726 = vmatprep.subr.mxu0 0.0
    %1727 = vmatpush1.msra.mxu0 0.0
    %1728 = vmatprep.subr.mxu0 0.0
    %1729 = vmatpush1.msra.mxu0 0.0
    %1730 = vmatprep.subr.mxu0 0.0
    %1731 = vmatpush1.msra.mxu0 0.0
    %1732 = vmatprep.subr.mxu0 0.0
    %1733 = vmatpush1.msra.mxu0 0.0
    %1734 = vmatprep.subr.mxu0 0.0
    %1735 = vmatpush1.msra.mxu0 0.0
    %1736 = vmatprep.subr.mxu0 0.0
    %1737 = vmatpush1.msra.mxu0 0.0
    %1738 = vmatprep.subr.mxu0 0.0
    %1739 = vmatpush1.msra.mxu0 0.0
    %1740 = vmatprep.subr.mxu0 0.0
    %1741 = vmatpush1.msra.mxu0 0.0
    %1742 = vmatprep.subr.mxu0 0.0
    %1743 = vmatpush1.msra.mxu0 0.0
    %1744 = vmatprep.subr.mxu0 0.0
    %1745 = vmatpush1.msra.mxu0 0.0
    %1746 = vmatprep.subr.mxu0 0.0
    %1747 = vmatpush1.msra.mxu0 0.0
    %1748 = vmatprep.subr.mxu0 0.0
    %1749 = vmatpush1.msra.mxu0 0.0
    %1750 = vmatprep.subr.mxu0 0.0
    %v1751 = vand.u32 %v1469, 4294901760
    %1752 = vmatpush1.msra.mxu0 %v1751
    %1753 = vmatprep.subr.mxu0 0.0
    %1754 = vmatpush2.msra.mxu0 0.0
    %1755 = vmatprep.subr.mxu0 0.0
    %1756 = vmatpush2.msra.mxu0 0.0
    %1757 = vmatprep.subr.mxu0 0.0
    %1758 = vmatpush2.msra.mxu0 0.0
    %1759 = vmatprep.subr.mxu0 0.0
    %1760 = vmatpush2.msra.mxu0 0.0
    %1761 = vmatprep.subr.mxu0 0.0
    %1762 = vmatpush2.msra.mxu0 0.0
    %1763 = vmatprep.subr.mxu0 0.0
    %1764 = vmatpush2.msra.mxu0 0.0
    %1765 = vmatprep.subr.mxu0 0.0
    %1766 = vmatpush2.msra.mxu0 0.0
    %1767 = vmatprep.subr.mxu0 0.0
    %1768 = vmatpush2.msra.mxu0 0.0
    %1769 = vmatprep.subr.mxu0 0.0
    %1770 = vmatpush2.msra.mxu0 0.0
    %1771 = vmatprep.subr.mxu0 0.0
    %1772 = vmatpush2.msra.mxu0 0.0
    %1773 = vmatprep.subr.mxu0 0.0
    %1774 = vmatpush2.msra.mxu0 0.0
    %1775 = vmatprep.subr.mxu0 0.0
    %1776 = vmatpush2.msra.mxu0 0.0
    %1777 = vmatprep.subr.mxu0 0.0
    %1778 = vmatpush2.msra.mxu0 0.0
    %1779 = vmatprep.subr.mxu0 0.0
    %1780 = vmatpush2.msra.mxu0 0.0
    %1781 = vmatprep.subr.mxu0 0.0
    %1782 = vmatpush2.msra.mxu0 0.0
    %1783 = vmatprep.subr.mxu0 0.0
    %1784 = vmatpush2.msra.mxu0 0.0
    %1785 = vmatprep.mubr.f32.mxu0 0.0
    %v1786 = vand.u32 %v1462, 4294901760
    %v1787 = vsub.f32 %v1462, %v1786
    %v1788 = vand.u32 %v1787, 4294901760
    %1789 = vmatmul.mubr.f32.gmra.mxu0 %v1788
    %v1790 = vpop.f32.mrf.mxu0
    %v1791 = vadd.f32 %v1710, %v1790
    %v1792 = vpop.f32.mrf.mxu0
    %1793 = vmatprep.mubr.f32.mxu0 0.0
    %v1794 = vand.u32 %v1465, 4294901760
    %v1795 = vsub.f32 %v1465, %v1794
    %v1796 = vand.u32 %v1795, 4294901760
    %1797 = vmatmul.mubr.f32.gmra.mxu0 %v1796
    %v1798 = vpop.f32.mrf.mxu0
    %v1799 = vadd.f32 %v1717, %v1798
    %v1800 = vpop.f32.mrf.mxu0
    %1801 = vdwg.mxu0
    %1802 = vmatprep.subr.mxu0 0.0
    %1803 = vmatpush1.msra.mxu0 0.0
    %1804 = vmatprep.subr.mxu0 0.0
    %1805 = vmatpush1.msra.mxu0 0.0
    %1806 = vmatprep.subr.mxu0 0.0
    %1807 = vmatpush1.msra.mxu0 0.0
    %1808 = vmatprep.subr.mxu0 0.0
    %1809 = vmatpush1.msra.mxu0 0.0
    %1810 = vmatprep.subr.mxu0 0.0
    %1811 = vmatpush1.msra.mxu0 0.0
    %1812 = vmatprep.subr.mxu0 0.0
    %1813 = vmatpush1.msra.mxu0 0.0
    %1814 = vmatprep.subr.mxu0 0.0
    %1815 = vmatpush1.msra.mxu0 0.0
    %1816 = vmatprep.subr.mxu0 0.0
    %1817 = vmatpush1.msra.mxu0 0.0
    %1818 = vmatprep.subr.mxu0 0.0
    %1819 = vmatpush1.msra.mxu0 0.0
    %1820 = vmatprep.subr.mxu0 0.0
    %1821 = vmatpush1.msra.mxu0 0.0
    %1822 = vmatprep.subr.mxu0 0.0
    %1823 = vmatpush1.msra.mxu0 0.0
    %1824 = vmatprep.subr.mxu0 0.0
    %1825 = vmatpush1.msra.mxu0 0.0
    %1826 = vmatprep.subr.mxu0 0.0
    %1827 = vmatpush1.msra.mxu0 0.0
    %1828 = vmatprep.subr.mxu0 0.0
    %1829 = vmatpush1.msra.mxu0 0.0
    %1830 = vmatprep.subr.mxu0 0.0
    %1831 = vmatpush1.msra.mxu0 0.0
    %1832 = vmatprep.subr.mxu0 0.0
    %v1833 = vand.u32 %v1469, 4294901760
    %v1834 = vsub.f32 %v1469, %v1833
    %v1835 = vand.u32 %v1834, 4294901760
    %1836 = vmatpush1.msra.mxu0 %v1835
    %1837 = vmatprep.subr.mxu0 0.0
    %1838 = vmatpush2.msra.mxu0 0.0
    %1839 = vmatprep.subr.mxu0 0.0
    %1840 = vmatpush2.msra.mxu0 0.0
    %1841 = vmatprep.subr.mxu0 0.0
    %1842 = vmatpush2.msra.mxu0 0.0
    %1843 = vmatprep.subr.mxu0 0.0
    %1844 = vmatpush2.msra.mxu0 0.0
    %1845 = vmatprep.subr.mxu0 0.0
    %1846 = vmatpush2.msra.mxu0 0.0
    %1847 = vmatprep.subr.mxu0 0.0
    %1848 = vmatpush2.msra.mxu0 0.0
    %1849 = vmatprep.subr.mxu0 0.0
    %1850 = vmatpush2.msra.mxu0 0.0
    %1851 = vmatprep.subr.mxu0 0.0
    %1852 = vmatpush2.msra.mxu0 0.0
    %1853 = vmatprep.subr.mxu0 0.0
    %1854 = vmatpush2.msra.mxu0 0.0
    %1855 = vmatprep.subr.mxu0 0.0
    %1856 = vmatpush2.msra.mxu0 0.0
    %1857 = vmatprep.subr.mxu0 0.0
    %1858 = vmatpush2.msra.mxu0 0.0
    %1859 = vmatprep.subr.mxu0 0.0
    %1860 = vmatpush2.msra.mxu0 0.0
    %1861 = vmatprep.subr.mxu0 0.0
    %1862 = vmatpush2.msra.mxu0 0.0
    %1863 = vmatprep.subr.mxu0 0.0
    %1864 = vmatpush2.msra.mxu0 0.0
    %1865 = vmatprep.subr.mxu0 0.0
    %1866 = vmatpush2.msra.mxu0 0.0
    %1867 = vmatprep.subr.mxu0 0.0
    %1868 = vmatpush2.msra.mxu0 0.0
    %1869 = vmatprep.mubr.f32.mxu0 0.0
    %v1870 = vand.u32 %v1462, 4294901760
    %1871 = vmatmul.mubr.f32.gmra.mxu0 %v1870
    %v1872 = vpop.f32.mrf.mxu0
    %v1873 = vadd.f32 %v1791, %v1872
    %v1874 = vpop.f32.mrf.mxu0
    %1875 = vmatprep.mubr.f32.mxu0 0.0
    %v1876 = vand.u32 %v1465, 4294901760
    %1877 = vmatmul.mubr.f32.gmra.mxu0 %v1876
    %v1878 = vpop.f32.mrf.mxu0
    %v1879 = vadd.f32 %v1799, %v1878
    %v1880 = vpop.f32.mrf.mxu0
    %1881 = vdwg.mxu0
    %1882 = vmatprep.subr.mxu0 0.0
    %1883 = vmatpush1.msra.mxu0 0.0
    %1884 = vmatprep.subr.mxu0 0.0
    %1885 = vmatpush1.msra.mxu0 0.0
    %1886 = vmatprep.subr.mxu0 0.0
    %1887 = vmatpush1.msra.mxu0 0.0
    %1888 = vmatprep.subr.mxu0 0.0
    %1889 = vmatpush1.msra.mxu0 0.0
    %1890 = vmatprep.subr.mxu0 0.0
    %1891 = vmatpush1.msra.mxu0 0.0
    %1892 = vmatprep.subr.mxu0 0.0
    %1893 = vmatpush1.msra.mxu0 0.0
    %1894 = vmatprep.subr.mxu0 0.0
    %1895 = vmatpush1.msra.mxu0 0.0
    %1896 = vmatprep.subr.mxu0 0.0
    %1897 = vmatpush1.msra.mxu0 0.0
    %1898 = vmatprep.subr.mxu0 0.0
    %1899 = vmatpush1.msra.mxu0 0.0
    %1900 = vmatprep.subr.mxu0 0.0
    %1901 = vmatpush1.msra.mxu0 0.0
    %1902 = vmatprep.subr.mxu0 0.0
    %1903 = vmatpush1.msra.mxu0 0.0
    %1904 = vmatprep.subr.mxu0 0.0
    %1905 = vmatpush1.msra.mxu0 0.0
    %1906 = vmatprep.subr.mxu0 0.0
    %1907 = vmatpush1.msra.mxu0 0.0
    %1908 = vmatprep.subr.mxu0 0.0
    %1909 = vmatpush1.msra.mxu0 0.0
    %1910 = vmatprep.subr.mxu0 0.0
    %1911 = vmatpush1.msra.mxu0 0.0
    %1912 = vmatprep.subr.mxu0 0.0
    %v1913 = vand.u32 %v1469, 4294901760
    %1914 = vmatpush1.msra.mxu0 %v1913
    %1915 = vmatprep.subr.mxu0 0.0
    %1916 = vmatpush2.msra.mxu0 0.0
    %1917 = vmatprep.subr.mxu0 0.0
    %1918 = vmatpush2.msra.mxu0 0.0
    %1919 = vmatprep.subr.mxu0 0.0
    %1920 = vmatpush2.msra.mxu0 0.0
    %1921 = vmatprep.subr.mxu0 0.0
    %1922 = vmatpush2.msra.mxu0 0.0
    %1923 = vmatprep.subr.mxu0 0.0
    %1924 = vmatpush2.msra.mxu0 0.0
    %1925 = vmatprep.subr.mxu0 0.0
    %1926 = vmatpush2.msra.mxu0 0.0
    %1927 = vmatprep.subr.mxu0 0.0
    %1928 = vmatpush2.msra.mxu0 0.0
    %1929 = vmatprep.subr.mxu0 0.0
    %1930 = vmatpush2.msra.mxu0 0.0
    %1931 = vmatprep.subr.mxu0 0.0
    %1932 = vmatpush2.msra.mxu0 0.0
    %1933 = vmatprep.subr.mxu0 0.0
    %1934 = vmatpush2.msra.mxu0 0.0
    %1935 = vmatprep.subr.mxu0 0.0
    %1936 = vmatpush2.msra.mxu0 0.0
    %1937 = vmatprep.subr.mxu0 0.0
    %1938 = vmatpush2.msra.mxu0 0.0
    %1939 = vmatprep.subr.mxu0 0.0
    %1940 = vmatpush2.msra.mxu0 0.0
    %1941 = vmatprep.subr.mxu0 0.0
    %1942 = vmatpush2.msra.mxu0 0.0
    %1943 = vmatprep.subr.mxu0 0.0
    %1944 = vmatpush2.msra.mxu0 0.0
    %1945 = vmatprep.subr.mxu0 0.0
    %1946 = vmatpush2.msra.mxu0 0.0
    %1947 = vmatprep.mubr.f32.mxu0 0.0
    %v1948 = vand.u32 %v1462, 4294901760
    %1949 = vmatmul.mubr.f32.gmra.mxu0 %v1948
    %v1950 = vpop.f32.mrf.mxu0
    %v1951 = vadd.f32 %v1873, %v1950
    %v1952 = vpop.f32.mrf.mxu0
    %1953 = vmatprep.mubr.f32.mxu0 0.0
    %v1954 = vand.u32 %v1465, 4294901760
    %1955 = vmatmul.mubr.f32.gmra.mxu0 %v1954
    %v1956 = vpop.f32.mrf.mxu0
    %v1957 = vadd.f32 %v1879, %v1956
    %v1958 = vpop.f32.mrf.mxu0
    %1959 = vdwg.mxu0
    %v1960 = vsub.f32 0.0, %v1444
    %v1961 = vsub.f32 0.0, %v1450
    %v1962 = vmul.f32 %v1960, 1.442695
    %v1963 = vpow.pop %v1962
    %v1964 = vmul.f32 %v1961, 1.442695
    %v1965 = vpow.pop %v1964
    %v1967 = vsel %vm1460, %v1963, 0
    %v1970 = vsel %vm1460, %v1965, 0
    %1972 = vmatprep.subr.mxu0 0.0
    %1973 = vmatpush1.msra.mxu0 0.0
    %1974 = vmatprep.subr.mxu0 0.0
    %1975 = vmatpush1.msra.mxu0 0.0
    %1976 = vmatprep.subr.mxu0 0.0
    %1977 = vmatpush1.msra.mxu0 0.0
    %1978 = vmatprep.subr.mxu0 0.0
    %1979 = vmatpush1.msra.mxu0 0.0
    %1980 = vmatprep.subr.mxu0 0.0
    %1981 = vmatpush1.msra.mxu0 0.0
    %1982 = vmatprep.subr.mxu0 0.0
    %1983 = vmatpush1.msra.mxu0 0.0
    %1984 = vmatprep.subr.mxu0 0.0
    %1985 = vmatpush1.msra.mxu0 0.0
    %1986 = vmatprep.subr.mxu0 0.0
    %1987 = vmatpush1.msra.mxu0 0.0
    %1988 = vmatprep.subr.mxu0 0.0
    %1989 = vmatpush1.msra.mxu0 0.0
    %1990 = vmatprep.subr.mxu0 0.0
    %1991 = vmatpush1.msra.mxu0 0.0
    %1992 = vmatprep.subr.mxu0 0.0
    %1993 = vmatpush1.msra.mxu0 0.0
    %1994 = vmatprep.subr.mxu0 0.0
    %1995 = vmatpush1.msra.mxu0 0.0
    %1996 = vmatprep.subr.mxu0 0.0
    %1997 = vmatpush1.msra.mxu0 0.0
    %1998 = vmatprep.subr.mxu0 0.0
    %1999 = vmatpush1.msra.mxu0 0.0
    %2000 = vmatprep.subr.mxu0 0.0
    %2001 = vmatpush1.msra.mxu0 0.0
    %2002 = vmatprep.subr.mxu0 0.0
    %v2003 = vand.u32 %v1469, 4294901760
    %2004 = vmatpush1.msra.mxu0 %v2003
    %2005 = vmatprep.subr.mxu0 0.0
    %2006 = vmatpush2.msra.mxu0 0.0
    %2007 = vmatprep.subr.mxu0 0.0
    %2008 = vmatpush2.msra.mxu0 0.0
    %2009 = vmatprep.subr.mxu0 0.0
    %2010 = vmatpush2.msra.mxu0 0.0
    %2011 = vmatprep.subr.mxu0 0.0
    %2012 = vmatpush2.msra.mxu0 0.0
    %2013 = vmatprep.subr.mxu0 0.0
    %2014 = vmatpush2.msra.mxu0 0.0
    %2015 = vmatprep.subr.mxu0 0.0
    %2016 = vmatpush2.msra.mxu0 0.0
    %2017 = vmatprep.subr.mxu0 0.0
    %2018 = vmatpush2.msra.mxu0 0.0
    %2019 = vmatprep.subr.mxu0 0.0
    %2020 = vmatpush2.msra.mxu0 0.0
    %2021 = vmatprep.subr.mxu0 0.0
    %2022 = vmatpush2.msra.mxu0 0.0
    %2023 = vmatprep.subr.mxu0 0.0
    %2024 = vmatpush2.msra.mxu0 0.0
    %2025 = vmatprep.subr.mxu0 0.0
    %2026 = vmatpush2.msra.mxu0 0.0
    %2027 = vmatprep.subr.mxu0 0.0
    %2028 = vmatpush2.msra.mxu0 0.0
    %2029 = vmatprep.subr.mxu0 0.0
    %2030 = vmatpush2.msra.mxu0 0.0
    %2031 = vmatprep.subr.mxu0 0.0
    %2032 = vmatpush2.msra.mxu0 0.0
    %2033 = vmatprep.subr.mxu0 0.0
    %2034 = vmatpush2.msra.mxu0 0.0
    %2035 = vmatprep.subr.mxu0 0.0
    %2036 = vmatpush2.msra.mxu0 0.0
    %2037 = vmatprep.mubr.f32.mxu0 0.0
    %v2038 = vand.u32 %v1967, 4294901760
    %v2039 = vsub.f32 %v1967, %v2038
    %v2040 = vand.u32 %v2039, 4294901760
    %v2041 = vsub.f32 %v2039, %v2040
    %v2042 = vand.u32 %v2041, 4294901760
    %2043 = vmatmul.mubr.f32.gmra.mxu0 %v2042
    %v2044 = vpop.f32.mrf.mxu0
    %v2045 = vadd.f32 0.0, %v2044
    %v2046 = vpop.f32.mrf.mxu0
    %2047 = vmatprep.mubr.f32.mxu0 0.0
    %v2048 = vand.u32 %v1970, 4294901760
    %v2049 = vsub.f32 %v1970, %v2048
    %v2050 = vand.u32 %v2049, 4294901760
    %v2051 = vsub.f32 %v2049, %v2050
    %v2052 = vand.u32 %v2051, 4294901760
    %2053 = vmatmul.mubr.f32.gmra.mxu0 %v2052
    %v2054 = vpop.f32.mrf.mxu0
    %v2055 = vadd.f32 0.0, %v2054
    %v2056 = vpop.f32.mrf.mxu0
    %2057 = vdwg.mxu0
    %2058 = vmatprep.subr.mxu0 0.0
    %2059 = vmatpush1.msra.mxu0 0.0
    %2060 = vmatprep.subr.mxu0 0.0
    %2061 = vmatpush1.msra.mxu0 0.0
    %2062 = vmatprep.subr.mxu0 0.0
    %2063 = vmatpush1.msra.mxu0 0.0
    %2064 = vmatprep.subr.mxu0 0.0
    %2065 = vmatpush1.msra.mxu0 0.0
    %2066 = vmatprep.subr.mxu0 0.0
    %2067 = vmatpush1.msra.mxu0 0.0
    %2068 = vmatprep.subr.mxu0 0.0
    %2069 = vmatpush1.msra.mxu0 0.0
    %2070 = vmatprep.subr.mxu0 0.0
    %2071 = vmatpush1.msra.mxu0 0.0
    %2072 = vmatprep.subr.mxu0 0.0
    %2073 = vmatpush1.msra.mxu0 0.0
    %2074 = vmatprep.subr.mxu0 0.0
    %2075 = vmatpush1.msra.mxu0 0.0
    %2076 = vmatprep.subr.mxu0 0.0
    %2077 = vmatpush1.msra.mxu0 0.0
    %2078 = vmatprep.subr.mxu0 0.0
    %2079 = vmatpush1.msra.mxu0 0.0
    %2080 = vmatprep.subr.mxu0 0.0
    %2081 = vmatpush1.msra.mxu0 0.0
    %2082 = vmatprep.subr.mxu0 0.0
    %2083 = vmatpush1.msra.mxu0 0.0
    %2084 = vmatprep.subr.mxu0 0.0
    %2085 = vmatpush1.msra.mxu0 0.0
    %2086 = vmatprep.subr.mxu0 0.0
    %2087 = vmatpush1.msra.mxu0 0.0
    %2088 = vmatprep.subr.mxu0 0.0
    %v2089 = vand.u32 %v1469, 4294901760
    %v2090 = vsub.f32 %v1469, %v2089
    %v2091 = vand.u32 %v2090, 4294901760
    %v2092 = vsub.f32 %v2090, %v2091
    %v2093 = vand.u32 %v2092, 4294901760
    %2094 = vmatpush1.msra.mxu0 %v2093
    %2095 = vmatprep.subr.mxu0 0.0
    %2096 = vmatpush2.msra.mxu0 0.0
    %2097 = vmatprep.subr.mxu0 0.0
    %2098 = vmatpush2.msra.mxu0 0.0
    %2099 = vmatprep.subr.mxu0 0.0
    %2100 = vmatpush2.msra.mxu0 0.0
    %2101 = vmatprep.subr.mxu0 0.0
    %2102 = vmatpush2.msra.mxu0 0.0
    %2103 = vmatprep.subr.mxu0 0.0
    %2104 = vmatpush2.msra.mxu0 0.0
    %2105 = vmatprep.subr.mxu0 0.0
    %2106 = vmatpush2.msra.mxu0 0.0
    %2107 = vmatprep.subr.mxu0 0.0
    %2108 = vmatpush2.msra.mxu0 0.0
    %2109 = vmatprep.subr.mxu0 0.0
    %2110 = vmatpush2.msra.mxu0 0.0
    %2111 = vmatprep.subr.mxu0 0.0
    %2112 = vmatpush2.msra.mxu0 0.0
    %2113 = vmatprep.subr.mxu0 0.0
    %2114 = vmatpush2.msra.mxu0 0.0
    %2115 = vmatprep.subr.mxu0 0.0
    %2116 = vmatpush2.msra.mxu0 0.0
    %2117 = vmatprep.subr.mxu0 0.0
    %2118 = vmatpush2.msra.mxu0 0.0
    %2119 = vmatprep.subr.mxu0 0.0
    %2120 = vmatpush2.msra.mxu0 0.0
    %2121 = vmatprep.subr.mxu0 0.0
    %2122 = vmatpush2.msra.mxu0 0.0
    %2123 = vmatprep.subr.mxu0 0.0
    %2124 = vmatpush2.msra.mxu0 0.0
    %2125 = vmatprep.subr.mxu0 0.0
    %2126 = vmatpush2.msra.mxu0 0.0
    %2127 = vmatprep.mubr.f32.mxu0 0.0
    %v2128 = vand.u32 %v1967, 4294901760
    %2129 = vmatmul.mubr.f32.gmra.mxu0 %v2128
    %v2130 = vpop.f32.mrf.mxu0
    %v2131 = vadd.f32 %v2045, %v2130
    %v2132 = vpop.f32.mrf.mxu0
    %2133 = vmatprep.mubr.f32.mxu0 0.0
    %v2134 = vand.u32 %v1970, 4294901760
    %2135 = vmatmul.mubr.f32.gmra.mxu0 %v2134
    %v2136 = vpop.f32.mrf.mxu0
    %v2137 = vadd.f32 %v2055, %v2136
    %v2138 = vpop.f32.mrf.mxu0
    %2139 = vdwg.mxu0
    %2140 = vmatprep.subr.mxu0 0.0
    %2141 = vmatpush1.msra.mxu0 0.0
    %2142 = vmatprep.subr.mxu0 0.0
    %2143 = vmatpush1.msra.mxu0 0.0
    %2144 = vmatprep.subr.mxu0 0.0
    %2145 = vmatpush1.msra.mxu0 0.0
    %2146 = vmatprep.subr.mxu0 0.0
    %2147 = vmatpush1.msra.mxu0 0.0
    %2148 = vmatprep.subr.mxu0 0.0
    %2149 = vmatpush1.msra.mxu0 0.0
    %2150 = vmatprep.subr.mxu0 0.0
    %2151 = vmatpush1.msra.mxu0 0.0
    %2152 = vmatprep.subr.mxu0 0.0
    %2153 = vmatpush1.msra.mxu0 0.0
    %2154 = vmatprep.subr.mxu0 0.0
    %2155 = vmatpush1.msra.mxu0 0.0
    %2156 = vmatprep.subr.mxu0 0.0
    %2157 = vmatpush1.msra.mxu0 0.0
    %2158 = vmatprep.subr.mxu0 0.0
    %2159 = vmatpush1.msra.mxu0 0.0
    %2160 = vmatprep.subr.mxu0 0.0
    %2161 = vmatpush1.msra.mxu0 0.0
    %2162 = vmatprep.subr.mxu0 0.0
    %2163 = vmatpush1.msra.mxu0 0.0
    %2164 = vmatprep.subr.mxu0 0.0
    %2165 = vmatpush1.msra.mxu0 0.0
    %2166 = vmatprep.subr.mxu0 0.0
    %2167 = vmatpush1.msra.mxu0 0.0
    %2168 = vmatprep.subr.mxu0 0.0
    %2169 = vmatpush1.msra.mxu0 0.0
    %2170 = vmatprep.subr.mxu0 0.0
    %v2171 = vand.u32 %v1469, 4294901760
    %v2172 = vsub.f32 %v1469, %v2171
    %2173 = vmatpush1.msra.mxu0 %v2172
    %2174 = vmatprep.subr.mxu0 0.0
    %2175 = vmatpush2.msra.mxu0 0.0
    %2176 = vmatprep.subr.mxu0 0.0
    %2177 = vmatpush2.msra.mxu0 0.0
    %2178 = vmatprep.subr.mxu0 0.0
    %2179 = vmatpush2.msra.mxu0 0.0
    %2180 = vmatprep.subr.mxu0 0.0
    %2181 = vmatpush2.msra.mxu0 0.0
    %2182 = vmatprep.subr.mxu0 0.0
    %2183 = vmatpush2.msra.mxu0 0.0
    %2184 = vmatprep.subr.mxu0 0.0
    %2185 = vmatpush2.msra.mxu0 0.0
    %2186 = vmatprep.subr.mxu0 0.0
    %2187 = vmatpush2.msra.mxu0 0.0
    %2188 = vmatprep.subr.mxu0 0.0
    %2189 = vmatpush2.msra.mxu0 0.0
    %2190 = vmatprep.subr.mxu0 0.0
    %2191 = vmatpush2.msra.mxu0 0.0
    %2192 = vmatprep.subr.mxu0 0.0
    %2193 = vmatpush2.msra.mxu0 0.0
    %2194 = vmatprep.subr.mxu0 0.0
    %2195 = vmatpush2.msra.mxu0 0.0
    %2196 = vmatprep.subr.mxu0 0.0
    %2197 = vmatpush2.msra.mxu0 0.0
    %2198 = vmatprep.subr.mxu0 0.0
    %2199 = vmatpush2.msra.mxu0 0.0
    %2200 = vmatprep.subr.mxu0 0.0
    %2201 = vmatpush2.msra.mxu0 0.0
    %2202 = vmatprep.subr.mxu0 0.0
    %2203 = vmatpush2.msra.mxu0 0.0
    %2204 = vmatprep.subr.mxu0 0.0
    %2205 = vmatpush2.msra.mxu0 0.0
    %2206 = vmatprep.mubr.f32.mxu0 0.0
    %v2207 = vand.u32 %v1967, 4294901760
    %v2208 = vsub.f32 %v1967, %v2207
    %2209 = vmatmul.mubr.f32.gmra.mxu0 %v2208
    %v2210 = vpop.f32.mrf.mxu0
    %v2211 = vadd.f32 %v2131, %v2210
    %v2212 = vpop.f32.mrf.mxu0
    %2213 = vmatprep.mubr.f32.mxu0 0.0
    %v2214 = vand.u32 %v1970, 4294901760
    %v2215 = vsub.f32 %v1970, %v2214
    %2216 = vmatmul.mubr.f32.gmra.mxu0 %v2215
    %v2217 = vpop.f32.mrf.mxu0
    %v2218 = vadd.f32 %v2137, %v2217
    %v2219 = vpop.f32.mrf.mxu0
    %2220 = vdwg.mxu0
    %2221 = vmatprep.subr.mxu0 0.0
    %2222 = vmatpush1.msra.mxu0 0.0
    %2223 = vmatprep.subr.mxu0 0.0
    %2224 = vmatpush1.msra.mxu0 0.0
    %2225 = vmatprep.subr.mxu0 0.0
    %2226 = vmatpush1.msra.mxu0 0.0
    %2227 = vmatprep.subr.mxu0 0.0
    %2228 = vmatpush1.msra.mxu0 0.0
    %2229 = vmatprep.subr.mxu0 0.0
    %2230 = vmatpush1.msra.mxu0 0.0
    %2231 = vmatprep.subr.mxu0 0.0
    %2232 = vmatpush1.msra.mxu0 0.0
    %2233 = vmatprep.subr.mxu0 0.0
    %2234 = vmatpush1.msra.mxu0 0.0
    %2235 = vmatprep.subr.mxu0 0.0
    %2236 = vmatpush1.msra.mxu0 0.0
    %2237 = vmatprep.subr.mxu0 0.0
    %2238 = vmatpush1.msra.mxu0 0.0
    %2239 = vmatprep.subr.mxu0 0.0
    %2240 = vmatpush1.msra.mxu0 0.0
    %2241 = vmatprep.subr.mxu0 0.0
    %2242 = vmatpush1.msra.mxu0 0.0
    %2243 = vmatprep.subr.mxu0 0.0
    %2244 = vmatpush1.msra.mxu0 0.0
    %2245 = vmatprep.subr.mxu0 0.0
    %2246 = vmatpush1.msra.mxu0 0.0
    %2247 = vmatprep.subr.mxu0 0.0
    %2248 = vmatpush1.msra.mxu0 0.0
    %2249 = vmatprep.subr.mxu0 0.0
    %2250 = vmatpush1.msra.mxu0 0.0
    %2251 = vmatprep.subr.mxu0 0.0
    %v2252 = vand.u32 %v1469, 4294901760
    %2253 = vmatpush1.msra.mxu0 %v2252
    %2254 = vmatprep.subr.mxu0 0.0
    %2255 = vmatpush2.msra.mxu0 0.0
    %2256 = vmatprep.subr.mxu0 0.0
    %2257 = vmatpush2.msra.mxu0 0.0
    %2258 = vmatprep.subr.mxu0 0.0
    %2259 = vmatpush2.msra.mxu0 0.0
    %2260 = vmatprep.subr.mxu0 0.0
    %2261 = vmatpush2.msra.mxu0 0.0
    %2262 = vmatprep.subr.mxu0 0.0
    %2263 = vmatpush2.msra.mxu0 0.0
    %2264 = vmatprep.subr.mxu0 0.0
    %2265 = vmatpush2.msra.mxu0 0.0
    %2266 = vmatprep.subr.mxu0 0.0
    %2267 = vmatpush2.msra.mxu0 0.0
    %2268 = vmatprep.subr.mxu0 0.0
    %2269 = vmatpush2.msra.mxu0 0.0
    %2270 = vmatprep.subr.mxu0 0.0
    %2271 = vmatpush2.msra.mxu0 0.0
    %2272 = vmatprep.subr.mxu0 0.0
    %2273 = vmatpush2.msra.mxu0 0.0
    %2274 = vmatprep.subr.mxu0 0.0
    %2275 = vmatpush2.msra.mxu0 0.0
    %2276 = vmatprep.subr.mxu0 0.0
    %2277 = vmatpush2.msra.mxu0 0.0
    %2278 = vmatprep.subr.mxu0 0.0
    %2279 = vmatpush2.msra.mxu0 0.0
    %2280 = vmatprep.subr.mxu0 0.0
    %2281 = vmatpush2.msra.mxu0 0.0
    %2282 = vmatprep.subr.mxu0 0.0
    %2283 = vmatpush2.msra.mxu0 0.0
    %2284 = vmatprep.subr.mxu0 0.0
    %2285 = vmatpush2.msra.mxu0 0.0
    %2286 = vmatprep.mubr.f32.mxu0 0.0
    %v2287 = vand.u32 %v1967, 4294901760
    %v2288 = vsub.f32 %v1967, %v2287
    %v2289 = vand.u32 %v2288, 4294901760
    %2290 = vmatmul.mubr.f32.gmra.mxu0 %v2289
    %v2291 = vpop.f32.mrf.mxu0
    %v2292 = vadd.f32 %v2211, %v2291
    %v2293 = vpop.f32.mrf.mxu0
    %2294 = vmatprep.mubr.f32.mxu0 0.0
    %v2295 = vand.u32 %v1970, 4294901760
    %v2296 = vsub.f32 %v1970, %v2295
    %v2297 = vand.u32 %v2296, 4294901760
    %2298 = vmatmul.mubr.f32.gmra.mxu0 %v2297
    %v2299 = vpop.f32.mrf.mxu0
    %v2300 = vadd.f32 %v2218, %v2299
    %v2301 = vpop.f32.mrf.mxu0
    %2302 = vdwg.mxu0
    %2303 = vmatprep.subr.mxu0 0.0
    %2304 = vmatpush1.msra.mxu0 0.0
    %2305 = vmatprep.subr.mxu0 0.0
    %2306 = vmatpush1.msra.mxu0 0.0
    %2307 = vmatprep.subr.mxu0 0.0
    %2308 = vmatpush1.msra.mxu0 0.0
    %2309 = vmatprep.subr.mxu0 0.0
    %2310 = vmatpush1.msra.mxu0 0.0
    %2311 = vmatprep.subr.mxu0 0.0
    %2312 = vmatpush1.msra.mxu0 0.0
    %2313 = vmatprep.subr.mxu0 0.0
    %2314 = vmatpush1.msra.mxu0 0.0
    %2315 = vmatprep.subr.mxu0 0.0
    %2316 = vmatpush1.msra.mxu0 0.0
    %2317 = vmatprep.subr.mxu0 0.0
    %2318 = vmatpush1.msra.mxu0 0.0
    %2319 = vmatprep.subr.mxu0 0.0
    %2320 = vmatpush1.msra.mxu0 0.0
    %2321 = vmatprep.subr.mxu0 0.0
    %2322 = vmatpush1.msra.mxu0 0.0
    %2323 = vmatprep.subr.mxu0 0.0
    %2324 = vmatpush1.msra.mxu0 0.0
    %2325 = vmatprep.subr.mxu0 0.0
    %2326 = vmatpush1.msra.mxu0 0.0
    %2327 = vmatprep.subr.mxu0 0.0
    %2328 = vmatpush1.msra.mxu0 0.0
    %2329 = vmatprep.subr.mxu0 0.0
    %2330 = vmatpush1.msra.mxu0 0.0
    %2331 = vmatprep.subr.mxu0 0.0
    %2332 = vmatpush1.msra.mxu0 0.0
    %2333 = vmatprep.subr.mxu0 0.0
    %v2334 = vand.u32 %v1469, 4294901760
    %v2335 = vsub.f32 %v1469, %v2334
    %v2336 = vand.u32 %v2335, 4294901760
    %2337 = vmatpush1.msra.mxu0 %v2336
    %2338 = vmatprep.subr.mxu0 0.0
    %2339 = vmatpush2.msra.mxu0 0.0
    %2340 = vmatprep.subr.mxu0 0.0
    %2341 = vmatpush2.msra.mxu0 0.0
    %2342 = vmatprep.subr.mxu0 0.0
    %2343 = vmatpush2.msra.mxu0 0.0
    %2344 = vmatprep.subr.mxu0 0.0
    %2345 = vmatpush2.msra.mxu0 0.0
    %2346 = vmatprep.subr.mxu0 0.0
    %2347 = vmatpush2.msra.mxu0 0.0
    %2348 = vmatprep.subr.mxu0 0.0
    %2349 = vmatpush2.msra.mxu0 0.0
    %2350 = vmatprep.subr.mxu0 0.0
    %2351 = vmatpush2.msra.mxu0 0.0
    %2352 = vmatprep.subr.mxu0 0.0
    %2353 = vmatpush2.msra.mxu0 0.0
    %2354 = vmatprep.subr.mxu0 0.0
    %2355 = vmatpush2.msra.mxu0 0.0
    %2356 = vmatprep.subr.mxu0 0.0
    %2357 = vmatpush2.msra.mxu0 0.0
    %2358 = vmatprep.subr.mxu0 0.0
    %2359 = vmatpush2.msra.mxu0 0.0
    %2360 = vmatprep.subr.mxu0 0.0
    %2361 = vmatpush2.msra.mxu0 0.0
    %2362 = vmatprep.subr.mxu0 0.0
    %2363 = vmatpush2.msra.mxu0 0.0
    %2364 = vmatprep.subr.mxu0 0.0
    %2365 = vmatpush2.msra.mxu0 0.0
    %2366 = vmatprep.subr.mxu0 0.0
    %2367 = vmatpush2.msra.mxu0 0.0
    %2368 = vmatprep.subr.mxu0 0.0
    %2369 = vmatpush2.msra.mxu0 0.0
    %2370 = vmatprep.mubr.f32.mxu0 0.0
    %v2371 = vand.u32 %v1967, 4294901760
    %2372 = vmatmul.mubr.f32.gmra.mxu0 %v2371
    %v2373 = vpop.f32.mrf.mxu0
    %v2374 = vadd.f32 %v2292, %v2373
    %v2375 = vpop.f32.mrf.mxu0
    %2376 = vmatprep.mubr.f32.mxu0 0.0
    %v2377 = vand.u32 %v1970, 4294901760
    %2378 = vmatmul.mubr.f32.gmra.mxu0 %v2377
    %v2379 = vpop.f32.mrf.mxu0
    %v2380 = vadd.f32 %v2300, %v2379
    %v2381 = vpop.f32.mrf.mxu0
    %2382 = vdwg.mxu0
    %2383 = vmatprep.subr.mxu0 0.0
    %2384 = vmatpush1.msra.mxu0 0.0
    %2385 = vmatprep.subr.mxu0 0.0
    %2386 = vmatpush1.msra.mxu0 0.0
    %2387 = vmatprep.subr.mxu0 0.0
    %2388 = vmatpush1.msra.mxu0 0.0
    %2389 = vmatprep.subr.mxu0 0.0
    %2390 = vmatpush1.msra.mxu0 0.0
    %2391 = vmatprep.subr.mxu0 0.0
    %2392 = vmatpush1.msra.mxu0 0.0
    %2393 = vmatprep.subr.mxu0 0.0
    %2394 = vmatpush1.msra.mxu0 0.0
    %2395 = vmatprep.subr.mxu0 0.0
    %2396 = vmatpush1.msra.mxu0 0.0
    %2397 = vmatprep.subr.mxu0 0.0
    %2398 = vmatpush1.msra.mxu0 0.0
    %2399 = vmatprep.subr.mxu0 0.0
    %2400 = vmatpush1.msra.mxu0 0.0
    %2401 = vmatprep.subr.mxu0 0.0
    %2402 = vmatpush1.msra.mxu0 0.0
    %2403 = vmatprep.subr.mxu0 0.0
    %2404 = vmatpush1.msra.mxu0 0.0
    %2405 = vmatprep.subr.mxu0 0.0
    %2406 = vmatpush1.msra.mxu0 0.0
    %2407 = vmatprep.subr.mxu0 0.0
    %2408 = vmatpush1.msra.mxu0 0.0
    %2409 = vmatprep.subr.mxu0 0.0
    %2410 = vmatpush1.msra.mxu0 0.0
    %2411 = vmatprep.subr.mxu0 0.0
    %2412 = vmatpush1.msra.mxu0 0.0
    %2413 = vmatprep.subr.mxu0 0.0
    %v2414 = vand.u32 %v1469, 4294901760
    %2415 = vmatpush1.msra.mxu0 %v2414
    %2416 = vmatprep.subr.mxu0 0.0
    %2417 = vmatpush2.msra.mxu0 0.0
    %2418 = vmatprep.subr.mxu0 0.0
    %2419 = vmatpush2.msra.mxu0 0.0
    %2420 = vmatprep.subr.mxu0 0.0
    %2421 = vmatpush2.msra.mxu0 0.0
    %2422 = vmatprep.subr.mxu0 0.0
    %2423 = vmatpush2.msra.mxu0 0.0
    %2424 = vmatprep.subr.mxu0 0.0
    %2425 = vmatpush2.msra.mxu0 0.0
    %2426 = vmatprep.subr.mxu0 0.0
    %2427 = vmatpush2.msra.mxu0 0.0
    %2428 = vmatprep.subr.mxu0 0.0
    %2429 = vmatpush2.msra.mxu0 0.0
    %2430 = vmatprep.subr.mxu0 0.0
    %2431 = vmatpush2.msra.mxu0 0.0
    %2432 = vmatprep.subr.mxu0 0.0
    %2433 = vmatpush2.msra.mxu0 0.0
    %2434 = vmatprep.subr.mxu0 0.0
    %2435 = vmatpush2.msra.mxu0 0.0
    %2436 = vmatprep.subr.mxu0 0.0
    %2437 = vmatpush2.msra.mxu0 0.0
    %2438 = vmatprep.subr.mxu0 0.0
    %2439 = vmatpush2.msra.mxu0 0.0
    %2440 = vmatprep.subr.mxu0 0.0
    %2441 = vmatpush2.msra.mxu0 0.0
    %2442 = vmatprep.subr.mxu0 0.0
    %2443 = vmatpush2.msra.mxu0 0.0
    %2444 = vmatprep.subr.mxu0 0.0
    %2445 = vmatpush2.msra.mxu0 0.0
    %2446 = vmatprep.subr.mxu0 0.0
    %2447 = vmatpush2.msra.mxu0 0.0
    %2448 = vmatprep.mubr.f32.mxu0 0.0
    %v2449 = vand.u32 %v1967, 4294901760
    %2450 = vmatmul.mubr.f32.gmra.mxu0 %v2449
    %v2451 = vpop.f32.mrf.mxu0
    %v2452 = vadd.f32 %v2374, %v2451
    %v2453 = vpop.f32.mrf.mxu0
    %2454 = vmatprep.mubr.f32.mxu0 0.0
    %v2455 = vand.u32 %v1970, 4294901760
    %2456 = vmatmul.mubr.f32.gmra.mxu0 %v2455
    %v2457 = vpop.f32.mrf.mxu0
    %v2458 = vadd.f32 %v2380, %v2457
    %v2459 = vpop.f32.mrf.mxu0
    %2460 = vdwg.mxu0
    %v2461 = vmul.f32 %v50, %v1951
    %v2462 = vmul.f32 %v51, %v1957
    %v2463 = vmul.f32 %v63, %v2452
    %v2464 = vmul.f32 %v64, %v2458
    %v2465 = vadd.f32 %v2461, %v2463
    %v2466 = vadd.f32 %v2462, %v2464
    %v2467 = vmul.f32 %v2465, -2.0
    %v2468 = vmul.f32 %v2466, -2.0
    %2469 = vst [vmem:[#allocation5] sm:$0xff] %v2467
    %2470 = vst [vmem:[#allocation5 + $0x8] sm:$0xff] %v2468
    // Predicated region
    $region30: #{tpu_custom_call.1} parent=1 // pred_check
      _
    $region31: #{tpu_custom_call.1} parent=1 // pred_check_branch
      %2472 = sbr.rel (0) target = $region33
    $region32: #{tpu_custom_call.1} parent=1 // pred_region
      %s2474 = ssub.s32 256, 256
      %2475 = vsyncadd [#allocation3], %s2474
      %s2476 = sshll.u32 [#allocation5], 4
      %s2477 = int_to_ptr.vmem [resolvable:$true] %s2476
      %2482 = dma.vmem_to_hbm [thread:$0]  %s2477, 256, %s6, [#allocation3], 128, 128, 8
    $region33: #{tpu_custom_call.1} parent=1 // pred_fallthru
      _
    // Predicated region
    $region34: #{tpu_custom_call.1} parent=1 // pred_check
      _
    $region35: #{tpu_custom_call.1} parent=1 // pred_check_branch
      %2484 = sbr.rel (0) target = $region37
    $region36: #{tpu_custom_call.1} parent=1 // pred_region
      %2485 = dma.done [#allocation3], 256
    $region37: #{tpu_custom_call.1} parent=1 // pred_fallthru
      _
    %2486 = vsyncpa [#allocation3], 1
    %2487 = vsyncpa [#allocation4], 1

</llo_original>
